<compile_context>
chip_gen: v6e
topology: v6e:2x2x1
jax: 0.10.0
libtpu: 0.0.40
codegen_flags: <defaults>
</compile_context>

<pallas_src>
import jax
import jax.numpy as jnp
from jax import lax
from jax.experimental import pallas as pl
from jax.experimental.pallas import tpu as pltpu

# ---- model hyper-parameters (match MambaBlock(d_model=4)) ----
D_MODEL = 4
D_STATE = 16
D_CONV = 4
EXPAND = 2
D_INNER = D_MODEL * EXPAND          # 8
D_HIDDEN = D_INNER // 2             # 4
LN_EPS = 1e-5
_INV_SQRT2 = 0.7071067811865476


def _gelu(x):
    # exact (erf) GELU, matches torch.nn.GELU() default
    return 0.5 * x * (1.0 + lax.erf(x * _INV_SQRT2))


def _softplus(x):
    return jnp.maximum(x, 0.0) + jnp.log1p(jnp.exp(-jnp.abs(x)))


# ----------------------------------------------------------------------------------
# Pallas kernel factory: one grid step == B_BLK batch elements, everything channels-first.
# ----------------------------------------------------------------------------------
def _make_kernel(B_BLK, L, CHUNK):
    R = B_BLK * D_MODEL                 # packed channel rows (d_model == d_hidden == 4)
    W = B_BLK * D_HIDDEN * D_STATE      # packed scan-state lanes (128 when B_BLK == 2)
    n_chunks = L // CHUNK

    def kernel(x_ref, big_ref, small_ref, cols_ref, out_ref, dA_scr, dBu_scr, h_scr):
        f32 = jnp.float32
        x = x_ref[...]                                   # (R, L): channels-first, lane-dense

        # ---- packed parameters (static slices of tiny refs) ----
        EA = big_ref[0:R, :]                             # (R, W): delta -> delta*A expansion
        EB = big_ref[R:2 * R, :]                         # (R, W): delta*u -> delta*u*B expansion
        G = big_ref[2 * R:3 * R, :]                      # (R, W): C folded with out_proj y-part
        Mavg = small_ref[0:R, :]                         # (R, R): per-batch channel mean
        Win = small_ref[R:3 * R, :]                      # (2R, R): in_proj (LN gamma folded)
        Wdt = small_ref[3 * R:4 * R, :]                  # (R, R): dt_proj
        Wu = small_ref[4 * R:5 * R, :]                   # (R, R): out_proj u-part (D folded)
        b_in = cols_ref[:, 0:1]                          # (2R, 1) (LN beta folded)
        b_dt = cols_ref[0:R, 1:2]
        conv_b = cols_ref[0:R, 2:3]
        b_out = cols_ref[0:R, 3:4]
        conv_w = cols_ref[0:R, 4:4 + D_CONV]             # (R, 4) depthwise taps per row

        # ---- LayerNorm over channels (group mean/var via tiny block-diagonal MXU dots) ----
        mu = jnp.dot(Mavg, x, preferred_element_type=f32)
        xc = x - mu
        var = jnp.dot(Mavg, xc * xc, preferred_element_type=f32)
        xn = xc * lax.rsqrt(var + LN_EPS)                # gamma/beta folded into Win / b_in

        # ---- in_proj (rows pre-permuted: first R rows -> conv branch, next R rows -> res) ----
        xr = jnp.dot(Win, xn, preferred_element_type=f32) + b_in    # (2R, L)
        xh = xr[0:R, :]
        res = xr[R:2 * R, :]

        # ---- depthwise conv1d along L (kernel=4, torch 'same' => pad left 1 / right 2) ----
        lane = lax.broadcasted_iota(jnp.int32, (1, L), 1)
        xm1 = jnp.where(lane >= 1, pltpu.roll(xh, 1, axis=1), 0.0)          # x[l-1]
        xp1 = jnp.where(lane <= L - 2, pltpu.roll(xh, L - 1, axis=1), 0.0)  # x[l+1]
        xp2 = jnp.where(lane <= L - 3, pltpu.roll(xh, L - 2, axis=1), 0.0)  # x[l+2]
        conv = (conv_w[:, 0:1] * xm1 + conv_w[:, 1:2] * xh +
                conv_w[:, 2:3] * xp1 + conv_w[:, 3:4] * xp2 + conv_b)
        u = _gelu(conv)                                  # (R, L): scan input / x_orig

        # ---- dt_proj -> GELU -> softplus (delta_softplus=True) ----
        dact = _softplus(_gelu(jnp.dot(Wdt, u, preferred_element_type=f32) + b_dt))

        # ---- dA / dBu for ALL timesteps, lane-dense (L, W); exp runs off the serial path ----
        dact_T = dact.T                                  # (L, R): single XLU layout crossing
        du_T = (dact * u).T                              # (L, R)
        dA_scr[...] = jnp.exp(jnp.dot(dact_T, EA, preferred_element_type=f32))   # (L, W)
        dBu_scr[...] = jnp.dot(du_T, EB, preferred_element_type=f32)             # (L, W)

        # ---- selective scan: serial recurrence on a (1, W) lane-dense state ----
        def chunk_body(ci, h):
            base = pl.multiple_of(ci * CHUNK, CHUNK)
            dA_blk = dA_scr[pl.ds(base, CHUNK), :]       # (CHUNK, W): unmasked, lane-dense
            dBu_blk = dBu_scr[pl.ds(base, CHUNK), :]
            hs = []
            for t in range(CHUNK):                       # unrolled dependent FMAs
                h = dA_blk[t:t + 1, :] * h + dBu_blk[t:t + 1, :]
                hs.append(h)
            h_scr[pl.ds(base, CHUNK), :] = jnp.concatenate(hs, axis=0)
            return h

        lax.fori_loop(0, n_chunks, chunk_body, jnp.zeros((1, W), f32))

        # ---- y = sum_s h*C folded with out_proj + D-skip + bias + residual (lane-dense) ----
        out = lax.dot_general(G, h_scr[...], (((1,), (1,)), ((), ())),
                              preferred_element_type=f32)            # (R, L)
        out = out + jnp.dot(Wu, u, preferred_element_type=f32) + b_out + res
        out_ref[...] = out.astype(out_ref.dtype)

    return kernel


# ----------------------------------------------------------------------------------
# Wrapper: parameter packing (block-diagonal over the packed batch) + pallas_call.
# ----------------------------------------------------------------------------------
def _pack_params(params, B_BLK):
    (ln_g, ln_b, w_in, b_in, conv_w, conv_b,
     w_dt, b_dt, A, B, Cp, Dp, w_out, b_out) = params
    f32 = jnp.float32
    dm, dh, ds = D_MODEL, D_HIDDEN, D_STATE
    eyeB = jnp.eye(B_BLK, dtype=f32)
    eyeH = jnp.eye(dh, dtype=f32)

    def bdiag(m):                       # block-diagonal over the packed batch
        return jnp.kron(eyeB, m.astype(f32))

    def btile(v):                       # tile a per-channel vector over the packed batch
        return jnp.tile(v.astype(f32), (B_BLK,))

    # lane expansions: row (bi*dh + ch) -> lanes [bi*dh*ds + ch*ds, +ds)
    EA = bdiag((A.astype(f32)[:, None, :] * eyeH[:, :, None]).reshape(dh, dh * ds))
    EB = bdiag((B.astype(f32)[:, None, :] * eyeH[:, :, None]).reshape(dh, dh * ds))
    w_out_t = w_out.T.astype(f32)                                    # (dm, d_inner) [out, in]
    # G[cm, ch*ds+s] = w_out[ch, cm] * C[ch, s]  -> one post-scan matmul does C-dot + out_proj
    G = bdiag((w_out_t[:, :dh, None] * Cp.astype(f32)[None, :, :]).reshape(dm, dh * ds))
    big = jnp.concatenate([EA, EB, G], axis=0)                       # (3R, W)

    w_in_t = w_in.T.astype(f32)                                      # (d_inner, dm) [out, in]
    gin = ln_g.astype(f32)[None, :]
    Mavg = bdiag(jnp.full((dm, dm), 1.0 / dm, f32))
    Win = jnp.concatenate([bdiag(w_in_t[:dh, :] * gin),              # conv/x branch rows
                           bdiag(w_in_t[dh:, :] * gin)], axis=0)     # res branch rows    (2R, R)
    Wdt = bdiag(w_dt.T.astype(f32))
    Wu = bdiag(w_out_t[:, dh:] + w_out_t[:, :dh] * Dp.astype(f32)[None, :])   # D-skip folded
    small = jnp.concatenate([Mavg, Win, Wdt, Wu], axis=0)            # (5R, R)

    R = B_BLK * dm
    b_in_eff = b_in.astype(f32) + w_in_t @ ln_b.astype(f32)          # LN beta folded
    cols = jnp.zeros((2 * R, 8), f32)
    cols = cols.at[:, 0].set(jnp.concatenate([btile(b_in_eff[:dh]), btile(b_in_eff[dh:])]))
    cols = cols.at[0:R, 1].set(btile(b_dt))
    cols = cols.at[0:R, 2].set(btile(conv_b))
    cols = cols.at[0:R, 3].set(btile(b_out))
    cols = cols.at[0:R, 4:4 + D_CONV].set(jnp.tile(conv_w.astype(f32), (B_BLK, 1)))
    return big, small, cols


def mamba_block_forward(x5, params):
    b, c, d, h, w = x5.shape
    assert c == D_MODEL
    L = d * h * w
    CHUNK = 16 if L % 16 == 0 else 8
    assert L % CHUNK == 0, "flattened spatial length must be a multiple of 8"

    # pack 2 batch elements per grid step -> 128-lane scan state, full (8, L) sublane tiles
    if b == 1:
        B_BLK, bp, xp5 = 1, 1, x5
    else:
        B_BLK = 2
        bp = b + (b % 2)
        xp5 = x5 if bp == b else jnp.concatenate(
            [x5, jnp.zeros((bp - b, c, d, h, w), x5.dtype)], axis=0)

    R = B_BLK * c
    W = B_BLK * D_HIDDEN * D_STATE
    x2 = xp5.astype(jnp.float32).reshape(bp * c, L)      # channels-first, L on the lane axis
    big, small, cols = _pack_params(params, B_BLK)
    kernel = _make_kernel(B_BLK, L, CHUNK)

    n_steps = bp // B_BLK
    macs = L * (6 * R * R + 3 * R * W) + L * W           # tiny matmuls + scan FMAs
    cost = pl.CostEstimate(
        flops=int(n_steps * (2 * macs + 40 * R * L)),
        transcendentals=int(n_steps * L * (W + 8 * R)),
        bytes_accessed=int(2 * bp * c * L * 4 +
                           n_steps * 4 * (big.size + small.size + cols.size)),
    )

    out2 = pl.pallas_call(
        kernel,
        out_shape=jax.ShapeDtypeStruct((bp * c, L), jnp.float32),
        grid=(n_steps,),
        in_specs=[pl.BlockSpec((R, L), lambda i: (i, 0)),
                  pl.BlockSpec(big.shape, lambda i: (0, 0)),
                  pl.BlockSpec(small.shape, lambda i: (0, 0)),
                  pl.BlockSpec(cols.shape, lambda i: (0, 0))],
        out_specs=pl.BlockSpec((R, L), lambda i: (i, 0)),
        scratch_shapes=[pltpu.VMEM((L, W), jnp.float32),   # dA, all timesteps, lane-dense
                        pltpu.VMEM((L, W), jnp.float32),   # dBu
                        pltpu.VMEM((L, W), jnp.float32)],  # h history
        compiler_params=pltpu.CompilerParams(
            dimension_semantics=("parallel",)),
        cost_estimate=cost,
    )(x2, big, small, cols)

    return out2[:b * c].reshape(b, c, d, h, w)


# ----------------------------------------------------------------------------------
# Deterministic synthetic parameters (shapes follow MambaBlock.__init__; LN/bias terms are
# randomized slightly so the gamma/beta/bias/D weight-folds are actually exercised).
# ----------------------------------------------------------------------------------
def make_params(key):
    ks = jax.random.split(key, 14)

    def xavier(k, shape, fan_in, fan_out, gain):
        bound = gain * (6.0 / (fan_in + fan_out)) ** 0.5
        return jax.random.uniform(k, shape, jnp.float32, -bound, bound)

    ln_g = 1.0 + 0.1 * jax.random.normal(ks[0], (D_MODEL,), jnp.float32)
    ln_b = 0.1 * jax.random.normal(ks[1], (D_MODEL,), jnp.float32)
    w_in = xavier(ks[2], (D_MODEL, D_INNER), D_MODEL, D_INNER, 0.02)   # [in, out]
    b_in = 0.1 * jax.random.normal(ks[3], (D_INNER,), jnp.float32)
    conv_w = xavier(ks[4], (D_HIDDEN, D_CONV), D_CONV, D_CONV, 0.02)
    conv_b = 0.1 * jax.random.normal(ks[5], (D_HIDDEN,), jnp.float32)
    bnd = 1.0 / (D_HIDDEN ** 0.5)
    w_dt = jax.random.uniform(ks[6], (D_HIDDEN, D_HIDDEN), jnp.float32, -bnd, bnd)
    b_dt = jax.random.uniform(ks[7], (D_HIDDEN,), jnp.float32, -bnd, bnd)
    # A taken negative (standard Mamba practice) so the synthetic scan stays well conditioned.
    A = -jnp.abs(jax.random.normal(ks[8], (D_HIDDEN, D_STATE), jnp.float32)) / (D_STATE ** 0.5)
    B = jax.random.normal(ks[9], (D_HIDDEN, D_STATE), jnp.float32)
    Cp = jax.random.normal(ks[10], (D_HIDDEN, D_STATE), jnp.float32)
    Dp = jax.random.normal(ks[11], (D_HIDDEN,), jnp.float32)
    w_out = xavier(ks[12], (D_INNER, D_MODEL), D_INNER, D_MODEL, 0.02)  # [in, out]
    b_out = 0.1 * jax.random.normal(ks[13], (D_MODEL,), jnp.float32)
    return (ln_g, ln_b, w_in, b_in, conv_w, conv_b,
            w_dt, b_dt, A, B, Cp, Dp, w_out, b_out)


# ----------------------------------------------------------------------------------
# Pure-JAX reference (same semantics) for a correctness check
# ----------------------------------------------------------------------------------
def mamba_block_ref(x5, params):
    b, c, d, h, w = x5.shape
    L = d * h * w
    (ln_g, ln_b, w_in, b_in, conv_w, conv_b,
     w_dt, b_dt, A, B, Cp, Dp, w_out, b_out) = params
    hp = jax.lax.Precision.HIGHEST
    x = jnp.transpose(x5.reshape(b, c, L), (0, 2, 1))           # (b, L, c)
    mu = x.mean(-1, keepdims=True)
    var = ((x - mu) ** 2).mean(-1, keepdims=True)
    xn = (x - mu) / jnp.sqrt(var + LN_EPS) * ln_g + ln_b
    xr = jnp.dot(xn, w_in, precision=hp) + b_in
    xh, res = xr[..., :D_HIDDEN], xr[..., D_HIDDEN:]
    xp = jnp.pad(xh, ((0, 0), (1, 2), (0, 0)))
    conv = sum(xp[:, j:j + L, :] * conv_w[:, j][None, None, :]
               for j in range(D_CONV)) + conv_b
    u = _gelu(conv)
    delta = _softplus(_gelu(jnp.dot(u, w_dt, precision=hp) + b_dt))
    dA = jnp.exp(delta[..., None] * A)
    dBu = (delta * u)[..., None] * B

    def scan_body(hstate, inp):
        dA_t, dBu_t = inp
        hstate = dA_t * hstate + dBu_t
        y = jnp.sum(hstate * Cp, axis=-1)
        return hstate, y

    h0 = jnp.zeros((b, D_HIDDEN, D_STATE), jnp.float32)
    _, ys = lax.scan(scan_body, h0, (jnp.swapaxes(dA, 0, 1), jnp.swapaxes(dBu, 0, 1)))
    y_ssm = jnp.swapaxes(ys, 0, 1) + u * Dp
    out = jnp.dot(jnp.concatenate([y_ssm, u], -1), w_out, precision=hp) + b_out + res
    return jnp.transpose(out, (0, 2, 1)).reshape(b, c, d, h, w)


if __name__ == "__main__":
    key = jax.random.PRNGKey(0)
    kx, kp = jax.random.split(key)
    # x: (4, 4, 2, 8, 8) -> L = 128 (lane-dense); 2 batches packed per grid step -> grid=(2,)
    b, c, d, h, w = 4, D_MODEL, 2, 8, 8
    x = jax.random.normal(kx, (b, c, d, h, w), jnp.float32)
    params = make_params(kp)

    out = jax.block_until_ready(jax.jit(mamba_block_forward)(x, params))

    ref = mamba_block_ref(x, params)
    assert out.shape == x.shape
    err = float(jnp.max(jnp.abs(out - ref)))
    assert jnp.allclose(out, ref, rtol=5e-4, atol=1e-4), f"max abs err {err}"
    print("KERNEL_OK")
</pallas_src>

<mosaic_0001>
module attributes {stable_mosaic.version = 11 : i64} {
  func.func @kernel(%arg0: i32, %arg1: memref<8x128xf32, #tpu.memory_space<vmem>>, %arg2: memref<24x128xf32, #tpu.memory_space<vmem>>, %arg3: memref<40x8xf32, #tpu.memory_space<vmem>>, %arg4: memref<16x8xf32, #tpu.memory_space<vmem>>, %arg5: memref<8x128xf32, #tpu.memory_space<vmem>>, %arg6: memref<128x128xf32, #tpu.memory_space<vmem>>, %arg7: memref<128x128xf32, #tpu.memory_space<vmem>>, %arg8: memref<128x128xf32, #tpu.memory_space<vmem>>) attributes {dimension_semantics = [#tpu.dimension_semantics<parallel>], iteration_bounds = array<i64: 2>, scalar_prefetch = 0 : i64, scratch_operands = 3 : i64, tpu.core_type = #tpu.core_type<tc>, window_params = [{transform_indices = @transform_0, window_bounds = array<i64: 8, 128>}, {pipeline_mode = #tpu.pipeline_mode<synchronous>, transform_indices = @transform_1, window_bounds = array<i64: 24, 128>}, {pipeline_mode = #tpu.pipeline_mode<synchronous>, transform_indices = @transform_2, window_bounds = array<i64: 40, 8>}, {pipeline_mode = #tpu.pipeline_mode<synchronous>, transform_indices = @transform_3, window_bounds = array<i64: 16, 8>}, {transform_indices = @transform_4, window_bounds = array<i64: 8, 128>}]} {
    %c0 = arith.constant 0 : index
    %c0_0 = arith.constant 0 : index
    %0 = vector.load %arg1[%c0, %c0_0] : memref<8x128xf32, #tpu.memory_space<vmem>>, vector<8x128xf32>
    %c0_1 = arith.constant 0 : index
    %c0_2 = arith.constant 0 : index
    %1 = vector.load %arg2[%c0_1, %c0_2] : memref<24x128xf32, #tpu.memory_space<vmem>>, vector<8x128xf32>
    %c8 = arith.constant 8 : index
    %c0_3 = arith.constant 0 : index
    %2 = vector.load %arg2[%c8, %c0_3] : memref<24x128xf32, #tpu.memory_space<vmem>>, vector<8x128xf32>
    %c16 = arith.constant 16 : index
    %c0_4 = arith.constant 0 : index
    %3 = vector.load %arg2[%c16, %c0_4] : memref<24x128xf32, #tpu.memory_space<vmem>>, vector<8x128xf32>
    %c0_5 = arith.constant 0 : index
    %c0_6 = arith.constant 0 : index
    %4 = vector.load %arg3[%c0_5, %c0_6] : memref<40x8xf32, #tpu.memory_space<vmem>>, vector<8x8xf32>
    %c8_7 = arith.constant 8 : index
    %c0_8 = arith.constant 0 : index
    %5 = vector.load %arg3[%c8_7, %c0_8] : memref<40x8xf32, #tpu.memory_space<vmem>>, vector<16x8xf32>
    %c24 = arith.constant 24 : index
    %c0_9 = arith.constant 0 : index
    %6 = vector.load %arg3[%c24, %c0_9] : memref<40x8xf32, #tpu.memory_space<vmem>>, vector<8x8xf32>
    %c32 = arith.constant 32 : index
    %c0_10 = arith.constant 0 : index
    %7 = vector.load %arg3[%c32, %c0_10] : memref<40x8xf32, #tpu.memory_space<vmem>>, vector<8x8xf32>
    %c0_11 = arith.constant 0 : index
    %c0_12 = arith.constant 0 : index
    %8 = vector.load %arg4[%c0_11, %c0_12] : memref<16x8xf32, #tpu.memory_space<vmem>>, vector<16x1xf32>
    %c0_13 = arith.constant 0 : index
    %c1 = arith.constant 1 : index
    %9 = vector.load %arg4[%c0_13, %c1] : memref<16x8xf32, #tpu.memory_space<vmem>>, vector<8x1xf32>
    %c0_14 = arith.constant 0 : index
    %c2 = arith.constant 2 : index
    %10 = vector.load %arg4[%c0_14, %c2] : memref<16x8xf32, #tpu.memory_space<vmem>>, vector<8x1xf32>
    %c0_15 = arith.constant 0 : index
    %c3 = arith.constant 3 : index
    %11 = vector.load %arg4[%c0_15, %c3] : memref<16x8xf32, #tpu.memory_space<vmem>>, vector<8x1xf32>
    %c0_16 = arith.constant 0 : index
    %c4 = arith.constant 4 : index
    %12 = vector.load %arg4[%c0_16, %c4] : memref<16x8xf32, #tpu.memory_space<vmem>>, vector<8x4xf32>
    %cst = arith.constant dense<0.000000e+00> : vector<8x128xf32>
    %13 = tpu.matmul %4, %0, %cst {dimension_numbers = #tpu.dot_dimension_numbers<[1], [0], [0], [1], [0, 0, 1, 1], [], []>} : vector<8x8xf32>, vector<8x128xf32>, vector<8x128xf32> -> vector<8x128xf32>
    %14 = arith.subf %0, %13 : vector<8x128xf32>
    %15 = arith.mulf %14, %14 : vector<8x128xf32>
    %cst_17 = arith.constant dense<0.000000e+00> : vector<8x128xf32>
    %16 = tpu.matmul %4, %15, %cst_17 {dimension_numbers = #tpu.dot_dimension_numbers<[1], [0], [0], [1], [0, 0, 1, 1], [], []>} : vector<8x8xf32>, vector<8x128xf32>, vector<8x128xf32> -> vector<8x128xf32>
    %cst_18 = arith.constant 9.99999974E-6 : f32
    %17 = vector.broadcast %cst_18 : f32 to vector<8x128xf32>
    %18 = arith.addf %16, %17 : vector<8x128xf32>
    %19 = math.rsqrt %18 : vector<8x128xf32>
    %20 = arith.mulf %14, %19 : vector<8x128xf32>
    %cst_19 = arith.constant dense<0.000000e+00> : vector<16x128xf32>
    %21 = tpu.matmul %5, %20, %cst_19 {dimension_numbers = #tpu.dot_dimension_numbers<[1], [0], [0], [1], [0, 0, 1, 1], [], []>} : vector<16x8xf32>, vector<8x128xf32>, vector<16x128xf32> -> vector<16x128xf32>
    %22 = vector.broadcast %8 : vector<16x1xf32> to vector<16x128xf32>
    %23 = arith.addf %21, %22 : vector<16x128xf32>
    %24 = vector.extract_strided_slice %23 {offsets = [0, 0], sizes = [8, 128], strides = [1, 1]} : vector<16x128xf32> to vector<8x128xf32>
    %25 = vector.extract_strided_slice %23 {offsets = [8, 0], sizes = [8, 128], strides = [1, 1]} : vector<16x128xf32> to vector<8x128xf32>
    %26 = tpu.iota {dimensions = array<i32: 1>} : vector<1x128xi32>
    %c1_i32 = arith.constant 1 : i32
    %27 = vector.broadcast %c1_i32 : i32 to vector<1x128xi32>
    %28 = arith.cmpi sge, %26, %27 : vector<1x128xi32>
    %c1_i32_20 = arith.constant 1 : i32
    %29 = tpu.dynamic_rotate %24 by %c1_i32_20 dim 1 : vector<8x128xf32>, i32 -> vector<8x128xf32>
    %cst_21 = arith.constant 0.000000e+00 : f32
    %30 = vector.shape_cast %28 : vector<1x128xi1> to vector<1x128xi1>
    %31 = vector.broadcast %30 : vector<1x128xi1> to vector<8x128xi1>
    %32 = vector.broadcast %cst_21 : f32 to vector<8x128xf32>
    %33 = arith.select %31, %29, %32 : vector<8x128xi1>, vector<8x128xf32>
    %c126_i32 = arith.constant 126 : i32
    %34 = vector.broadcast %c126_i32 : i32 to vector<1x128xi32>
    %35 = arith.cmpi sle, %26, %34 : vector<1x128xi32>
    %c127_i32 = arith.constant 127 : i32
    %36 = tpu.dynamic_rotate %24 by %c127_i32 dim 1 : vector<8x128xf32>, i32 -> vector<8x128xf32>
    %cst_22 = arith.constant 0.000000e+00 : f32
    %37 = vector.shape_cast %35 : vector<1x128xi1> to vector<1x128xi1>
    %38 = vector.broadcast %37 : vector<1x128xi1> to vector<8x128xi1>
    %39 = vector.broadcast %cst_22 : f32 to vector<8x128xf32>
    %40 = arith.select %38, %36, %39 : vector<8x128xi1>, vector<8x128xf32>
    %c125_i32 = arith.constant 125 : i32
    %41 = vector.broadcast %c125_i32 : i32 to vector<1x128xi32>
    %42 = arith.cmpi sle, %26, %41 : vector<1x128xi32>
    %c126_i32_23 = arith.constant 126 : i32
    %43 = tpu.dynamic_rotate %24 by %c126_i32_23 dim 1 : vector<8x128xf32>, i32 -> vector<8x128xf32>
    %cst_24 = arith.constant 0.000000e+00 : f32
    %44 = vector.shape_cast %42 : vector<1x128xi1> to vector<1x128xi1>
    %45 = vector.broadcast %44 : vector<1x128xi1> to vector<8x128xi1>
    %46 = vector.broadcast %cst_24 : f32 to vector<8x128xf32>
    %47 = arith.select %45, %43, %46 : vector<8x128xi1>, vector<8x128xf32>
    %48 = vector.extract_strided_slice %12 {offsets = [0, 0], sizes = [8, 1], strides = [1, 1]} : vector<8x4xf32> to vector<8x1xf32>
    %49 = vector.broadcast %48 : vector<8x1xf32> to vector<8x128xf32>
    %50 = arith.mulf %49, %33 : vector<8x128xf32>
    %51 = vector.extract_strided_slice %12 {offsets = [0, 1], sizes = [8, 1], strides = [1, 1]} : vector<8x4xf32> to vector<8x1xf32>
    %52 = vector.broadcast %51 : vector<8x1xf32> to vector<8x128xf32>
    %53 = arith.mulf %52, %24 : vector<8x128xf32>
    %54 = arith.addf %50, %53 : vector<8x128xf32>
    %55 = vector.extract_strided_slice %12 {offsets = [0, 2], sizes = [8, 1], strides = [1, 1]} : vector<8x4xf32> to vector<8x1xf32>
    %56 = vector.broadcast %55 : vector<8x1xf32> to vector<8x128xf32>
    %57 = arith.mulf %56, %40 : vector<8x128xf32>
    %58 = arith.addf %54, %57 : vector<8x128xf32>
    %59 = vector.extract_strided_slice %12 {offsets = [0, 3], sizes = [8, 1], strides = [1, 1]} : vector<8x4xf32> to vector<8x1xf32>
    %60 = vector.broadcast %59 : vector<8x1xf32> to vector<8x128xf32>
    %61 = arith.mulf %60, %47 : vector<8x128xf32>
    %62 = arith.addf %58, %61 : vector<8x128xf32>
    %63 = vector.broadcast %10 : vector<8x1xf32> to vector<8x128xf32>
    %64 = arith.addf %62, %63 : vector<8x128xf32>
    %cst_25 = arith.constant 5.000000e-01 : f32
    %65 = vector.broadcast %cst_25 : f32 to vector<8x128xf32>
    %66 = arith.mulf %65, %64 : vector<8x128xf32>
    %cst_26 = arith.constant 0.707106769 : f32
    %67 = vector.broadcast %cst_26 : f32 to vector<8x128xf32>
    %68 = arith.mulf %64, %67 : vector<8x128xf32>
    %69 = math.erf %68 : vector<8x128xf32>
    %cst_27 = arith.constant 1.000000e+00 : f32
    %70 = vector.broadcast %cst_27 : f32 to vector<8x128xf32>
    %71 = arith.addf %70, %69 : vector<8x128xf32>
    %72 = arith.mulf %66, %71 : vector<8x128xf32>
    %cst_28 = arith.constant dense<0.000000e+00> : vector<8x128xf32>
    %73 = tpu.matmul %6, %72, %cst_28 {dimension_numbers = #tpu.dot_dimension_numbers<[1], [0], [0], [1], [0, 0, 1, 1], [], []>} : vector<8x8xf32>, vector<8x128xf32>, vector<8x128xf32> -> vector<8x128xf32>
    %74 = vector.broadcast %9 : vector<8x1xf32> to vector<8x128xf32>
    %75 = arith.addf %73, %74 : vector<8x128xf32>
    %cst_29 = arith.constant 5.000000e-01 : f32
    %76 = vector.broadcast %cst_29 : f32 to vector<8x128xf32>
    %77 = arith.mulf %76, %75 : vector<8x128xf32>
    %cst_30 = arith.constant 0.707106769 : f32
    %78 = vector.broadcast %cst_30 : f32 to vector<8x128xf32>
    %79 = arith.mulf %75, %78 : vector<8x128xf32>
    %80 = math.erf %79 : vector<8x128xf32>
    %cst_31 = arith.constant 1.000000e+00 : f32
    %81 = vector.broadcast %cst_31 : f32 to vector<8x128xf32>
    %82 = arith.addf %81, %80 : vector<8x128xf32>
    %83 = arith.mulf %77, %82 : vector<8x128xf32>
    %cst_32 = arith.constant 0.000000e+00 : f32
    %84 = vector.broadcast %cst_32 : f32 to vector<8x128xf32>
    %85 = arith.maximumf %83, %84 : vector<8x128xf32>
    %86 = math.absf %83 : vector<8x128xf32>
    %cst_33 = arith.constant 0.000000e+00 : f32
    %87 = vector.broadcast %cst_33 : f32 to vector<8x128xf32>
    %88 = arith.subf %87, %86 : vector<8x128xf32>
    %89 = math.exp %88 : vector<8x128xf32>
    %90 = math.log1p %89 : vector<8x128xf32>
    %91 = arith.addf %85, %90 : vector<8x128xf32>
    %92 = tpu.transpose %91, [1, 0] : vector<8x128xf32> -> vector<128x8xf32>
    %93 = arith.mulf %91, %72 : vector<8x128xf32>
    %94 = tpu.transpose %93, [1, 0] : vector<8x128xf32> -> vector<128x8xf32>
    %cst_34 = arith.constant dense<0.000000e+00> : vector<128x128xf32>
    %95 = tpu.matmul %92, %1, %cst_34 {dimension_numbers = #tpu.dot_dimension_numbers<[1], [0], [0], [1], [0, 0, 1, 1], [], []>} : vector<128x8xf32>, vector<8x128xf32>, vector<128x128xf32> -> vector<128x128xf32>
    %96 = math.exp %95 : vector<128x128xf32>
    %c0_35 = arith.constant 0 : index
    %c0_36 = arith.constant 0 : index
    %97 = vector.load %arg6[%c0_35, %c0_36] : memref<128x128xf32, #tpu.memory_space<vmem>>, vector<128x128xf32>
    tpu.vector_store %arg6[%c0_35, %c0_36], %96 {strides = array<i32>} : memref<128x128xf32, #tpu.memory_space<vmem>>, vector<128x128xf32>,
    %cst_37 = arith.constant dense<0.000000e+00> : vector<128x128xf32>
    %98 = tpu.matmul %94, %2, %cst_37 {dimension_numbers = #tpu.dot_dimension_numbers<[1], [0], [0], [1], [0, 0, 1, 1], [], []>} : vector<128x8xf32>, vector<8x128xf32>, vector<128x128xf32> -> vector<128x128xf32>
    %c0_38 = arith.constant 0 : index
    %c0_39 = arith.constant 0 : index
    %99 = vector.load %arg7[%c0_38, %c0_39] : memref<128x128xf32, #tpu.memory_space<vmem>>, vector<128x128xf32>
    tpu.vector_store %arg7[%c0_38, %c0_39], %98 {strides = array<i32>} : memref<128x128xf32, #tpu.memory_space<vmem>>, vector<128x128xf32>,
    %cst_40 = arith.constant 0.000000e+00 : f32
    %100 = vector.broadcast %cst_40 : f32 to vector<1x128xf32>
    %c0_i32 = arith.constant 0 : i32
    %c8_i32 = arith.constant 8 : i32
    %101 = arith.addi %c0_i32, %c8_i32 : i32
    %c1_i32_41 = arith.constant 1 : i32
    %102 = scf.for %arg9 = %c0_i32 to %101 step %c1_i32_41 iter_args(%arg10 = %100) -> (vector<1x128xf32>)  : i32 {
      %c16_i32 = arith.constant 16 : i32
      %111 = arith.muli %arg9, %c16_i32 : i32
      %112 = tpu.assume_multiple %111, 16 : i32
      %113 = arith.index_cast %112 : i32 to index
      %c0_49 = arith.constant 0 : index
      %114 = vector.load %arg6[%113, %c0_49] : memref<128x128xf32, #tpu.memory_space<vmem>>, vector<16x128xf32>
      %115 = arith.index_cast %112 : i32 to index
      %c0_50 = arith.constant 0 : index
      %116 = vector.load %arg7[%115, %c0_50] : memref<128x128xf32, #tpu.memory_space<vmem>>, vector<16x128xf32>
      %117 = vector.extract_strided_slice %114 {offsets = [0, 0], sizes = [1, 128], strides = [1, 1]} : vector<16x128xf32> to vector<1x128xf32>
      %118 = arith.mulf %117, %arg10 : vector<1x128xf32>
      %119 = vector.extract_strided_slice %116 {offsets = [0, 0], sizes = [1, 128], strides = [1, 1]} : vector<16x128xf32> to vector<1x128xf32>
      %120 = arith.addf %118, %119 : vector<1x128xf32>
      %121 = vector.extract_strided_slice %114 {offsets = [1, 0], sizes = [1, 128], strides = [1, 1]} : vector<16x128xf32> to vector<1x128xf32>
      %122 = arith.mulf %121, %120 : vector<1x128xf32>
      %123 = vector.extract_strided_slice %116 {offsets = [1, 0], sizes = [1, 128], strides = [1, 1]} : vector<16x128xf32> to vector<1x128xf32>
      %124 = arith.addf %122, %123 : vector<1x128xf32>
      %125 = vector.extract_strided_slice %114 {offsets = [2, 0], sizes = [1, 128], strides = [1, 1]} : vector<16x128xf32> to vector<1x128xf32>
      %126 = arith.mulf %125, %124 : vector<1x128xf32>
      %127 = vector.extract_strided_slice %116 {offsets = [2, 0], sizes = [1, 128], strides = [1, 1]} : vector<16x128xf32> to vector<1x128xf32>
      %128 = arith.addf %126, %127 : vector<1x128xf32>
      %129 = vector.extract_strided_slice %114 {offsets = [3, 0], sizes = [1, 128], strides = [1, 1]} : vector<16x128xf32> to vector<1x128xf32>
      %130 = arith.mulf %129, %128 : vector<1x128xf32>
      %131 = vector.extract_strided_slice %116 {offsets = [3, 0], sizes = [1, 128], strides = [1, 1]} : vector<16x128xf32> to vector<1x128xf32>
      %132 = arith.addf %130, %131 : vector<1x128xf32>
      %133 = vector.extract_strided_slice %114 {offsets = [4, 0], sizes = [1, 128], strides = [1, 1]} : vector<16x128xf32> to vector<1x128xf32>
      %134 = arith.mulf %133, %132 : vector<1x128xf32>
      %135 = vector.extract_strided_slice %116 {offsets = [4, 0], sizes = [1, 128], strides = [1, 1]} : vector<16x128xf32> to vector<1x128xf32>
      %136 = arith.addf %134, %135 : vector<1x128xf32>
      %137 = vector.extract_strided_slice %114 {offsets = [5, 0], sizes = [1, 128], strides = [1, 1]} : vector<16x128xf32> to vector<1x128xf32>
      %138 = arith.mulf %137, %136 : vector<1x128xf32>
      %139 = vector.extract_strided_slice %116 {offsets = [5, 0], sizes = [1, 128], strides = [1, 1]} : vector<16x128xf32> to vector<1x128xf32>
      %140 = arith.addf %138, %139 : vector<1x128xf32>
      %141 = vector.extract_strided_slice %114 {offsets = [6, 0], sizes = [1, 128], strides = [1, 1]} : vector<16x128xf32> to vector<1x128xf32>
      %142 = arith.mulf %141, %140 : vector<1x128xf32>
      %143 = vector.extract_strided_slice %116 {offsets = [6, 0], sizes = [1, 128], strides = [1, 1]} : vector<16x128xf32> to vector<1x128xf32>
      %144 = arith.addf %142, %143 : vector<1x128xf32>
      %145 = vector.extract_strided_slice %114 {offsets = [7, 0], sizes = [1, 128], strides = [1, 1]} : vector<16x128xf32> to vector<1x128xf32>
      %146 = arith.mulf %145, %144 : vector<1x128xf32>
      %147 = vector.extract_strided_slice %116 {offsets = [7, 0], sizes = [1, 128], strides = [1, 1]} : vector<16x128xf32> to vector<1x128xf32>
      %148 = arith.addf %146, %147 : vector<1x128xf32>
      %149 = vector.extract_strided_slice %114 {offsets = [8, 0], sizes = [1, 128], strides = [1, 1]} : vector<16x128xf32> to vector<1x128xf32>
      %150 = arith.mulf %149, %148 : vector<1x128xf32>
      %151 = vector.extract_strided_slice %116 {offsets = [8, 0], sizes = [1, 128], strides = [1, 1]} : vector<16x128xf32> to vector<1x128xf32>
      %152 = arith.addf %150, %151 : vector<1x128xf32>
      %153 = vector.extract_strided_slice %114 {offsets = [9, 0], sizes = [1, 128], strides = [1, 1]} : vector<16x128xf32> to vector<1x128xf32>
      %154 = arith.mulf %153, %152 : vector<1x128xf32>
      %155 = vector.extract_strided_slice %116 {offsets = [9, 0], sizes = [1, 128], strides = [1, 1]} : vector<16x128xf32> to vector<1x128xf32>
      %156 = arith.addf %154, %155 : vector<1x128xf32>
      %157 = vector.extract_strided_slice %114 {offsets = [10, 0], sizes = [1, 128], strides = [1, 1]} : vector<16x128xf32> to vector<1x128xf32>
      %158 = arith.mulf %157, %156 : vector<1x128xf32>
      %159 = vector.extract_strided_slice %116 {offsets = [10, 0], sizes = [1, 128], strides = [1, 1]} : vector<16x128xf32> to vector<1x128xf32>
      %160 = arith.addf %158, %159 : vector<1x128xf32>
      %161 = vector.extract_strided_slice %114 {offsets = [11, 0], sizes = [1, 128], strides = [1, 1]} : vector<16x128xf32> to vector<1x128xf32>
      %162 = arith.mulf %161, %160 : vector<1x128xf32>
      %163 = vector.extract_strided_slice %116 {offsets = [11, 0], sizes = [1, 128], strides = [1, 1]} : vector<16x128xf32> to vector<1x128xf32>
      %164 = arith.addf %162, %163 : vector<1x128xf32>
      %165 = vector.extract_strided_slice %114 {offsets = [12, 0], sizes = [1, 128], strides = [1, 1]} : vector<16x128xf32> to vector<1x128xf32>
      %166 = arith.mulf %165, %164 : vector<1x128xf32>
      %167 = vector.extract_strided_slice %116 {offsets = [12, 0], sizes = [1, 128], strides = [1, 1]} : vector<16x128xf32> to vector<1x128xf32>
      %168 = arith.addf %166, %167 : vector<1x128xf32>
      %169 = vector.extract_strided_slice %114 {offsets = [13, 0], sizes = [1, 128], strides = [1, 1]} : vector<16x128xf32> to vector<1x128xf32>
      %170 = arith.mulf %169, %168 : vector<1x128xf32>
      %171 = vector.extract_strided_slice %116 {offsets = [13, 0], sizes = [1, 128], strides = [1, 1]} : vector<16x128xf32> to vector<1x128xf32>
      %172 = arith.addf %170, %171 : vector<1x128xf32>
      %173 = vector.extract_strided_slice %114 {offsets = [14, 0], sizes = [1, 128], strides = [1, 1]} : vector<16x128xf32> to vector<1x128xf32>
      %174 = arith.mulf %173, %172 : vector<1x128xf32>
      %175 = vector.extract_strided_slice %116 {offsets = [14, 0], sizes = [1, 128], strides = [1, 1]} : vector<16x128xf32> to vector<1x128xf32>
      %176 = arith.addf %174, %175 : vector<1x128xf32>
      %177 = vector.extract_strided_slice %114 {offsets = [15, 0], sizes = [1, 128], strides = [1, 1]} : vector<16x128xf32> to vector<1x128xf32>
      %178 = arith.mulf %177, %176 : vector<1x128xf32>
      %179 = vector.extract_strided_slice %116 {offsets = [15, 0], sizes = [1, 128], strides = [1, 1]} : vector<16x128xf32> to vector<1x128xf32>
      %180 = arith.addf %178, %179 : vector<1x128xf32>
      %181 = tpu.concatenate %120, %124, %128, %132, %136, %140, %144, %148, %152, %156, %160, %164, %168, %172, %176, %180 in 0 : vector<1x128xf32>, vector<1x128xf32>, vector<1x128xf32>, vector<1x128xf32>, vector<1x128xf32>, vector<1x128xf32>, vector<1x128xf32>, vector<1x128xf32>, vector<1x128xf32>, vector<1x128xf32>, vector<1x128xf32>, vector<1x128xf32>, vector<1x128xf32>, vector<1x128xf32>, vector<1x128xf32>, vector<1x128xf32> -> vector<16x128xf32>
      %182 = arith.index_cast %112 : i32 to index
      %c0_51 = arith.constant 0 : index
      %183 = vector.load %arg8[%182, %c0_51] : memref<128x128xf32, #tpu.memory_space<vmem>>, vector<16x128xf32>
      tpu.vector_store %arg8[%182, %c0_51], %181 {strides = array<i32>} : memref<128x128xf32, #tpu.memory_space<vmem>>, vector<16x128xf32>,
      scf.yield %180 : vector<1x128xf32>
    }
    %c8_i32_42 = arith.constant 8 : i32
    %c0_43 = arith.constant 0 : index
    %c0_44 = arith.constant 0 : index
    %103 = vector.load %arg8[%c0_43, %c0_44] : memref<128x128xf32, #tpu.memory_space<vmem>>, vector<128x128xf32>
    %cst_45 = arith.constant dense<0.000000e+00> : vector<8x128xf32>
    %104 = tpu.matmul %3, %103, %cst_45 {dimension_numbers = #tpu.dot_dimension_numbers<[1], [1], [0], [0], [0, 0, 1, 0], [], []>} : vector<8x128xf32>, vector<128x128xf32>, vector<8x128xf32> -> vector<8x128xf32>
    %cst_46 = arith.constant dense<0.000000e+00> : vector<8x128xf32>
    %105 = tpu.matmul %7, %72, %cst_46 {dimension_numbers = #tpu.dot_dimension_numbers<[1], [0], [0], [1], [0, 0, 1, 1], [], []>} : vector<8x8xf32>, vector<8x128xf32>, vector<8x128xf32> -> vector<8x128xf32>
    %106 = arith.addf %104, %105 : vector<8x128xf32>
    %107 = vector.broadcast %11 : vector<8x1xf32> to vector<8x128xf32>
    %108 = arith.addf %106, %107 : vector<8x128xf32>
    %109 = arith.addf %108, %25 : vector<8x128xf32>
    %c0_47 = arith.constant 0 : index
    %c0_48 = arith.constant 0 : index
    %110 = vector.load %arg5[%c0_47, %c0_48] : memref<8x128xf32, #tpu.memory_space<vmem>>, vector<8x128xf32>
    tpu.vector_store %arg5[%c0_47, %c0_48], %109 {strides = array<i32>} : memref<8x128xf32, #tpu.memory_space<vmem>>, vector<8x128xf32>,
    return
  }
  func.func @transform_0(%arg0: i32) -> (i32, i32) {
    %c0_i32 = arith.constant 0 : i32
    %c0_i32_0 = arith.constant 0 : i32
    return %arg0, %c0_i32 : i32, i32
  }
  func.func @transform_1(%arg0: i32) -> (i32, i32) {
    %c0_i32 = arith.constant 0 : i32
    %c0_i32_0 = arith.constant 0 : i32
    %c0_i32_1 = arith.constant 0 : i32
    return %c0_i32, %c0_i32_0 : i32, i32
  }
  func.func @transform_2(%arg0: i32) -> (i32, i32) {
    %c0_i32 = arith.constant 0 : i32
    %c0_i32_0 = arith.constant 0 : i32
    %c0_i32_1 = arith.constant 0 : i32
    return %c0_i32, %c0_i32_0 : i32, i32
  }
  func.func @transform_3(%arg0: i32) -> (i32, i32) {
    %c0_i32 = arith.constant 0 : i32
    %c0_i32_0 = arith.constant 0 : i32
    %c0_i32_1 = arith.constant 0 : i32
    return %c0_i32, %c0_i32_0 : i32, i32
  }
  func.func @transform_4(%arg0: i32) -> (i32, i32) {
    %c0_i32 = arith.constant 0 : i32
    %c0_i32_0 = arith.constant 0 : i32
    return %arg0, %c0_i32 : i32, i32
  }
}

</mosaic_0001>

<llo_original>
// kernel: tile.33
$region0: #{tile.33}
  #allocation0 [shape = 's32[1]{0}', space=sflag, size = 0x4, scoped, tag = 'scoped memory for tile.33']
  %s0 = inlined_call_operand.vmem [shape: f32[4], index: 0, kind: input, shape index: {}]
  %s1 = inlined_call_operand.vmem [shape: f32[2,4], index: 1, kind: output, shape index: {}]
  // Predicated region
  $region2: #{tile.33} parent=0 // pred_check
    _
  $region3: #{tile.33} parent=0 // pred_check_branch
    %3 = sbr.rel (0) target = $region5
  $region4: #{tile.33} parent=0 // pred_region
    _
  $region5: #{tile.33} parent=0 // pred_fallthru
    _
  %v4 = vld [vmem:[%s0] ss:$0 sm:$0xff]
  %5 = vst [vmem:[%s1] sm:$0x3] %v4

// kernel: mamba_block_forward.1
$region0: #{mamba_block_forward.1}
  #allocation0 [shape = 'u32[]', space=smem, size = 0x4, offset = 0x4, fixed_abs, tag = 'smem constant byte address 0x4 - core index']
  #allocation1 [shape = 'u32[144,128]{1,0:T(1,128)}', space=vmem, size = 0x12000, scoped, tag = 'internal scratch']
  #allocation2 [shape = 'f32[128,128]{1,0:T(8,128)}', space=vmem, size = 0x10000, scoped, tag = 'scratch operand']
  #allocation3 [shape = 'f32[128,128]{1,0:T(8,128)}', space=vmem, size = 0x10000, scoped, tag = 'scratch operand']
  #allocation4 [shape = 'f32[128,128]{1,0:T(8,128)}', space=vmem, size = 0x10000, scoped, tag = 'scratch operand']
  %s0 = inlined_call_operand.vmem [shape: f32[16,128], index: 0, kind: input, shape index: {}]
  %s1 = inlined_call_operand.vmem [shape: f32[24,128], index: 1, kind: input, shape index: {}]
  %s2 = inlined_call_operand.vmem [shape: f32[40,8], index: 2, kind: input, shape index: {}]
  %s3 = inlined_call_operand.vmem [shape: f32[16,8], index: 3, kind: input, shape index: {}]
  %s4 = inlined_call_operand.vmem [shape: f32[16,128], index: 4, kind: output, shape index: {}]
  %s5 = sld [smem:[#allocation0]]
  $region56: #{mamba_block_forward.1} parent=0
    _
  %s7 = ssub.s32 1, %s5
  %s8 = scalar_select 0, %s7, %s5
  loop: start=0, step=1, limit=4
  $region2: #{mamba_block_forward.1} parent=0 // loop_pre_header
    _
  $region3: #{mamba_block_forward.1} parent=0 // loop_header
    %s10 = sphi 0, %s14
    %p11 = scmp.ge.s32.totalorder %s10, 4
    %s20 = sphi 0, %s22
    %s23 = sphi 0, %s20
    %s24 = sphi 0, %s23
    %s40 = sphi 0, %s24
    %s44 = sphi 0, %s44
    %s46 = sphi 0, %s44
    %s47 = sphi 0, %s46
    %s61 = sphi 0, %s47
    %s65 = sphi 0, %s65
    %s67 = sphi 0, %s65
    %s68 = sphi 0, %s67
    %s82 = sphi 0, %s68
    %s86 = sphi 0, %s86
    %s88 = sphi 0, %s86
    %s89 = sphi 0, %s88
    %s103 = sphi 0, %s89
    %s109 = sphi 0, %s111
    %s112 = sphi 0, %s109
    %s113 = sphi 0, %s112
    %s129 = sphi 0, %s113
  $region4: #{mamba_block_forward.1} parent=0 // loop_header_branch
    %13 = sbr.rel (%p11) target = $region8
  $region5: #{mamba_block_forward.1} parent=0 // loop_body
    %s15 = ssub.s32 %s10, 1
    %s16 = ssub.s32 %s10, 2
    %s17 = sadd.s32 %s10, 1
    %s18 = ssub.s32 %s10, %s17
    %p19 = scmp.eq.s32.totalorder %s18, 0
    %s21 = sadd.s32 %s20, 1
    %s22 = scalar_select %p19, %s20, %s21
    %p25 = pneg %p19
    %p26 = scmp.eq.s32.totalorder %s10, 1
    %p27 = por %p25, %p26
    %p28 = scmp.ne.s32.totalorder %s20, %s23
    %p29 = scmp.eq.s32.totalorder %s10, 0
    %p30 = por %p28, %p29
    %p31 = scmp.ne.s32.totalorder %s20, %s23
    %p32 = scmp.eq.s32.totalorder %s15, 1
    %p33 = por %p31, %p32
    %p34 = scmp.ne.s32.totalorder %s23, %s24
    %p35 = scmp.eq.s32.totalorder %s15, 0
    %p36 = por %p34, %p35
    %p37 = scmp.ne.s32.totalorder %s23, %s24
    %p38 = scmp.eq.s32.totalorder %s16, 1
    %p39 = por %p37, %p38
    %p41 = scmp.ne.s32.totalorder %s24, %s40
    %p42 = scmp.eq.s32.totalorder %s16, 0
    %p43 = por %p41, %p42
    %s45 = sadd.s32 %s44, 1
    %p48 = scmp.eq.s32.totalorder %s10, 1
    %p49 = scmp.ne.s32.totalorder %s44, %s46
    %p50 = scmp.eq.s32.totalorder %s10, 0
    %p51 = por %p49, %p50
    %p52 = scmp.ne.s32.totalorder %s44, %s46
    %p53 = scmp.eq.s32.totalorder %s15, 1
    %p54 = por %p52, %p53
    %p55 = scmp.ne.s32.totalorder %s46, %s47
    %p56 = scmp.eq.s32.totalorder %s15, 0
    %p57 = por %p55, %p56
    %p58 = scmp.ne.s32.totalorder %s46, %s47
    %p59 = scmp.eq.s32.totalorder %s16, 1
    %p60 = por %p58, %p59
    %p62 = scmp.ne.s32.totalorder %s47, %s61
    %p63 = scmp.eq.s32.totalorder %s16, 0
    %p64 = por %p62, %p63
    %s66 = sadd.s32 %s65, 1
    %p69 = scmp.eq.s32.totalorder %s10, 1
    %p70 = scmp.ne.s32.totalorder %s65, %s67
    %p71 = scmp.eq.s32.totalorder %s10, 0
    %p72 = por %p70, %p71
    %p73 = scmp.ne.s32.totalorder %s65, %s67
    %p74 = scmp.eq.s32.totalorder %s15, 1
    %p75 = por %p73, %p74
    %p76 = scmp.ne.s32.totalorder %s67, %s68
    %p77 = scmp.eq.s32.totalorder %s15, 0
    %p78 = por %p76, %p77
    %p79 = scmp.ne.s32.totalorder %s67, %s68
    %p80 = scmp.eq.s32.totalorder %s16, 1
    %p81 = por %p79, %p80
    %p83 = scmp.ne.s32.totalorder %s68, %s82
    %p84 = scmp.eq.s32.totalorder %s16, 0
    %p85 = por %p83, %p84
    %s87 = sadd.s32 %s86, 1
    %p90 = scmp.eq.s32.totalorder %s10, 1
    %p91 = scmp.ne.s32.totalorder %s86, %s88
    %p92 = scmp.eq.s32.totalorder %s10, 0
    %p93 = por %p91, %p92
    %p94 = scmp.ne.s32.totalorder %s86, %s88
    %p95 = scmp.eq.s32.totalorder %s15, 1
    %p96 = por %p94, %p95
    %p97 = scmp.ne.s32.totalorder %s88, %s89
    %p98 = scmp.eq.s32.totalorder %s15, 0
    %p99 = por %p97, %p98
    %p100 = scmp.ne.s32.totalorder %s88, %s89
    %p101 = scmp.eq.s32.totalorder %s16, 1
    %p102 = por %p100, %p101
    %p104 = scmp.ne.s32.totalorder %s89, %s103
    %p105 = scmp.eq.s32.totalorder %s16, 0
    %p106 = por %p104, %p105
    %s107 = ssub.s32 %s10, %s17
    %p108 = scmp.eq.s32.totalorder %s107, 0
    %s110 = sadd.s32 %s109, 1
    %s111 = scalar_select %p108, %s109, %s110
    %p114 = pneg %p108
    %p115 = scmp.eq.s32.totalorder %s10, 1
    %p116 = por %p114, %p115
    %p117 = scmp.ne.s32.totalorder %s109, %s112
    %p118 = scmp.eq.s32.totalorder %s10, 0
    %p119 = por %p117, %p118
    %p120 = scmp.ne.s32.totalorder %s109, %s112
    %p121 = scmp.eq.s32.totalorder %s15, 1
    %p122 = por %p120, %p121
    %p123 = scmp.ne.s32.totalorder %s112, %s113
    %p124 = scmp.eq.s32.totalorder %s15, 0
    %p125 = por %p123, %p124
    %p126 = scmp.ne.s32.totalorder %s112, %s113
    %p127 = scmp.eq.s32.totalorder %s16, 1
    %p128 = por %p126, %p127
    %p130 = scmp.ne.s32.totalorder %s113, %s129
    %p131 = scmp.eq.s32.totalorder %s16, 0
    %p132 = por %p130, %p131
    %p133 = scmp.le.s32.totalorder 1, %s10
    %p134 = scmp.lt.s32.totalorder %s10, 3
    %p135 = pnand %p133, %p134
    %p136 = pneg %p135
    // Predicated region
    $region9: #{mamba_block_forward.1} parent=5 // pred_check
      _
    $region10: #{mamba_block_forward.1} parent=5 // pred_check_branch
      %138 = sbr.rel (%p135) target = $region12
    $region11: #{mamba_block_forward.1} parent=5 // pred_region
      %s139 = ssub.s32 %s10, 1
      // Predicated region
      $region13: #{mamba_block_forward.1} parent=11 // pred_check
        %p140 = pneg %p57
      $region14: #{mamba_block_forward.1} parent=11 // pred_check_branch
        %142 = sbr.rel (%p140) target = $region16
      $region15: #{mamba_block_forward.1} parent=11 // pred_region
        _
      $region16: #{mamba_block_forward.1} parent=11 // pred_fallthru
        _
      // Predicated region
      $region17: #{mamba_block_forward.1} parent=11 // pred_check
        %p143 = pneg %p78
      $region18: #{mamba_block_forward.1} parent=11 // pred_check_branch
        %145 = sbr.rel (%p143) target = $region20
      $region19: #{mamba_block_forward.1} parent=11 // pred_region
        _
      $region20: #{mamba_block_forward.1} parent=11 // pred_fallthru
        _
      // Predicated region
      $region21: #{mamba_block_forward.1} parent=11 // pred_check
        %p146 = pneg %p99
      $region22: #{mamba_block_forward.1} parent=11 // pred_check_branch
        %148 = sbr.rel (%p146) target = $region24
      $region23: #{mamba_block_forward.1} parent=11 // pred_region
        _
      $region24: #{mamba_block_forward.1} parent=11 // pred_fallthru
        _
    $region12: #{mamba_block_forward.1} parent=5 // pred_fallthru
      _
    %p149 = scmp.lt.s32.totalorder %s10, 2
    // Predicated region
    $region25: #{mamba_block_forward.1} parent=5 // pred_check
      %p150 = pneg %p149
    $region26: #{mamba_block_forward.1} parent=5 // pred_check_branch
      %152 = sbr.rel (%p150) target = $region28
    $region27: #{mamba_block_forward.1} parent=5 // pred_region
      // Predicated region
      $region29: #{mamba_block_forward.1} parent=27 // pred_check
        %p153 = pneg %p30
      $region30: #{mamba_block_forward.1} parent=27 // pred_check_branch
        %155 = sbr.rel (%p153) target = $region32
      $region31: #{mamba_block_forward.1} parent=27 // pred_region
        %p156 = scmp.lt.s32.totalorder %s10, 1
        %s157 = scalar_select %p156, %s10, 1
        %s158 = smul.addr %s157, 8
        %s159 = scalar_lea.vmem %s0, %s158
      $region32: #{mamba_block_forward.1} parent=27 // pred_fallthru
        _
    $region28: #{mamba_block_forward.1} parent=5 // pred_fallthru
      _
    %p160 = scmp.le.s32.totalorder 1, %s10
    %p161 = scmp.lt.s32.totalorder %s10, 3
    %p162 = pnand %p160, %p161
    %p163 = pneg %p162
    // Predicated region
    $region33: #{mamba_block_forward.1} parent=5 // pred_check
      _
    $region34: #{mamba_block_forward.1} parent=5 // pred_check_branch
      %165 = sbr.rel (%p162) target = $region36
    $region35: #{mamba_block_forward.1} parent=5 // pred_region
      %s166 = ssub.s32 %s10, 1
      %p167 = scmp.lt.s32.totalorder %s15, 1
      %s168 = scalar_select %p167, %s15, 1
      %s169 = smul.addr %s168, 8
      %s170 = scalar_lea.vmem %s0, %s169
      %p171 = pneg %p36
      %p172 = pneg %p33
      %p173 = pneg %p57
      %p174 = pneg %p54
      %p175 = pneg %p78
      %p176 = pneg %p75
      %p177 = pneg %p99
      %p178 = pneg %p96
      %p179 = pneg %p125
      %p180 = pneg %p122
      %p181 = scmp.lt.s32.totalorder %s15, 1
      %s182 = scalar_select %p181, %s15, 1
      %s183 = smul.addr %s182, 8
      %s184 = scalar_lea.vmem %s4, %s183
      %p185 = scmp.lt.s32.totalorder %s15, 1
      %s186 = scalar_select %p185, %s15, 1
      %s187 = smul.addr %s186, 8
      %s188 = scalar_lea.vmem %s0, %s187
      %p189 = scmp.lt.s32.totalorder %s15, 1
      %s190 = scalar_select %p189, %s15, 1
      %s191 = smul.addr %s190, 8
      %s192 = scalar_lea.vmem %s4, %s191
      %v193 = vld [vmem:[%s188] sm:$0xff]
      %v194 = vld [vmem:[%s1] sm:$0xff]
      %v195 = vld [vmem:[%s1 + $0x8] sm:$0xff]
      %v196 = vld [vmem:[%s1 + $0x10] sm:$0xff]
      %v197 = vld [vmem:[%s2] sm:$0xff]
      %v198 = vld [vmem:[%s2 + $0x8] sm:$0xff]
      %v199 = vld [vmem:[%s2 + $0x10] sm:$0xff]
      %v200 = vld [vmem:[%s2 + $0x18] sm:$0xff]
      %v201 = vld [vmem:[%s2 + $0x20] sm:$0xff]
      %v202 = vld [vmem:[%s3] sm:$0xff]
      %v203 = vld [vmem:[%s3 + $0x8] sm:$0xff]
      %vm204 = vcmask 64512
      %v206 = vsel %vm204, %v197, 0
      %208 = vmatprep.subr.mxu0 0.0
      %209 = vmatpush1.msra.mxu0 0.0
      %210 = vmatprep.subr.mxu0 0.0
      %211 = vmatpush1.msra.mxu0 0.0
      %212 = vmatprep.subr.mxu0 0.0
      %213 = vmatpush1.msra.mxu0 0.0
      %214 = vmatprep.subr.mxu0 0.0
      %215 = vmatpush1.msra.mxu0 0.0
      %216 = vmatprep.subr.mxu0 0.0
      %217 = vmatpush1.msra.mxu0 0.0
      %218 = vmatprep.subr.mxu0 0.0
      %219 = vmatpush1.msra.mxu0 0.0
      %220 = vmatprep.subr.mxu0 0.0
      %221 = vmatpush1.msra.mxu0 0.0
      %222 = vmatprep.subr.mxu0 0.0
      %223 = vmatpush1.msra.mxu0 0.0
      %224 = vmatprep.subr.mxu0 0.0
      %225 = vmatpush1.msra.mxu0 0.0
      %226 = vmatprep.subr.mxu0 0.0
      %227 = vmatpush1.msra.mxu0 0.0
      %228 = vmatprep.subr.mxu0 0.0
      %229 = vmatpush1.msra.mxu0 0.0
      %230 = vmatprep.subr.mxu0 0.0
      %231 = vmatpush1.msra.mxu0 0.0
      %232 = vmatprep.subr.mxu0 0.0
      %233 = vmatpush1.msra.mxu0 0.0
      %234 = vmatprep.subr.mxu0 0.0
      %235 = vmatpush1.msra.mxu0 0.0
      %236 = vmatprep.subr.mxu0 0.0
      %237 = vmatpush1.msra.mxu0 0.0
      %238 = vmatprep.subr.mxu0 0.0
      %239 = vmatpush1.msra.mxu0 %v193
      %240 = vmatprep.subr.mxu0 0.0
      %241 = vmatpush2.msra.mxu0 0.0
      %242 = vmatprep.subr.mxu0 0.0
      %243 = vmatpush2.msra.mxu0 0.0
      %244 = vmatprep.subr.mxu0 0.0
      %245 = vmatpush2.msra.mxu0 0.0
      %246 = vmatprep.subr.mxu0 0.0
      %247 = vmatpush2.msra.mxu0 0.0
      %248 = vmatprep.subr.mxu0 0.0
      %249 = vmatpush2.msra.mxu0 0.0
      %250 = vmatprep.subr.mxu0 0.0
      %251 = vmatpush2.msra.mxu0 0.0
      %252 = vmatprep.subr.mxu0 0.0
      %253 = vmatpush2.msra.mxu0 0.0
      %254 = vmatprep.subr.mxu0 0.0
      %255 = vmatpush2.msra.mxu0 0.0
      %256 = vmatprep.subr.mxu0 0.0
      %257 = vmatpush2.msra.mxu0 0.0
      %258 = vmatprep.subr.mxu0 0.0
      %259 = vmatpush2.msra.mxu0 0.0
      %260 = vmatprep.subr.mxu0 0.0
      %261 = vmatpush2.msra.mxu0 0.0
      %262 = vmatprep.subr.mxu0 0.0
      %263 = vmatpush2.msra.mxu0 0.0
      %264 = vmatprep.subr.mxu0 0.0
      %265 = vmatpush2.msra.mxu0 0.0
      %266 = vmatprep.subr.mxu0 0.0
      %267 = vmatpush2.msra.mxu0 0.0
      %268 = vmatprep.subr.mxu0 0.0
      %269 = vmatpush2.msra.mxu0 0.0
      %270 = vmatprep.subr.mxu0 0.0
      %271 = vmatpush2.msra.mxu0 0.0
      %272 = vmatprep.mubr.f32.mxu0 0.0
      %273 = vmatmul.mubr.f32.gmra.mxu0 %v206
      %v274 = vpop.f32.mrf.mxu0
      %v275 = vadd.f32 0.0, %v274
      %v276 = vpop.f32.mrf.mxu0
      %277 = vdwg.mxu0
      %v278 = vsub.f32 %v193, %v275
      %v279 = vmul.f32 %v278, %v278
      %280 = vmatprep.subr.mxu0 0.0
      %281 = vmatpush1.msra.mxu0 0.0
      %282 = vmatprep.subr.mxu0 0.0
      %283 = vmatpush1.msra.mxu0 0.0
      %284 = vmatprep.subr.mxu0 0.0
      %285 = vmatpush1.msra.mxu0 0.0
      %286 = vmatprep.subr.mxu0 0.0
      %287 = vmatpush1.msra.mxu0 0.0
      %288 = vmatprep.subr.mxu0 0.0
      %289 = vmatpush1.msra.mxu0 0.0
      %290 = vmatprep.subr.mxu0 0.0
      %291 = vmatpush1.msra.mxu0 0.0
      %292 = vmatprep.subr.mxu0 0.0
      %293 = vmatpush1.msra.mxu0 0.0
      %294 = vmatprep.subr.mxu0 0.0
      %295 = vmatpush1.msra.mxu0 0.0
      %296 = vmatprep.subr.mxu0 0.0
      %297 = vmatpush1.msra.mxu0 0.0
      %298 = vmatprep.subr.mxu0 0.0
      %299 = vmatpush1.msra.mxu0 0.0
      %300 = vmatprep.subr.mxu0 0.0
      %301 = vmatpush1.msra.mxu0 0.0
      %302 = vmatprep.subr.mxu0 0.0
      %303 = vmatpush1.msra.mxu0 0.0
      %304 = vmatprep.subr.mxu0 0.0
      %305 = vmatpush1.msra.mxu0 0.0
      %306 = vmatprep.subr.mxu0 0.0
      %307 = vmatpush1.msra.mxu0 0.0
      %308 = vmatprep.subr.mxu0 0.0
      %309 = vmatpush1.msra.mxu0 0.0
      %310 = vmatprep.subr.mxu0 0.0
      %311 = vmatpush1.msra.mxu0 %v279
      %312 = vmatprep.subr.mxu0 0.0
      %313 = vmatpush2.msra.mxu0 0.0
      %314 = vmatprep.subr.mxu0 0.0
      %315 = vmatpush2.msra.mxu0 0.0
      %316 = vmatprep.subr.mxu0 0.0
      %317 = vmatpush2.msra.mxu0 0.0
      %318 = vmatprep.subr.mxu0 0.0
      %319 = vmatpush2.msra.mxu0 0.0
      %320 = vmatprep.subr.mxu0 0.0
      %321 = vmatpush2.msra.mxu0 0.0
      %322 = vmatprep.subr.mxu0 0.0
      %323 = vmatpush2.msra.mxu0 0.0
      %324 = vmatprep.subr.mxu0 0.0
      %325 = vmatpush2.msra.mxu0 0.0
      %326 = vmatprep.subr.mxu0 0.0
      %327 = vmatpush2.msra.mxu0 0.0
      %328 = vmatprep.subr.mxu0 0.0
      %329 = vmatpush2.msra.mxu0 0.0
      %330 = vmatprep.subr.mxu0 0.0
      %331 = vmatpush2.msra.mxu0 0.0
      %332 = vmatprep.subr.mxu0 0.0
      %333 = vmatpush2.msra.mxu0 0.0
      %334 = vmatprep.subr.mxu0 0.0
      %335 = vmatpush2.msra.mxu0 0.0
      %336 = vmatprep.subr.mxu0 0.0
      %337 = vmatpush2.msra.mxu0 0.0
      %338 = vmatprep.subr.mxu0 0.0
      %339 = vmatpush2.msra.mxu0 0.0
      %340 = vmatprep.subr.mxu0 0.0
      %341 = vmatpush2.msra.mxu0 0.0
      %342 = vmatprep.subr.mxu0 0.0
      %343 = vmatpush2.msra.mxu0 0.0
      %344 = vmatprep.mubr.f32.mxu0 0.0
      %345 = vmatmul.mubr.f32.gmra.mxu0 %v206
      %v346 = vpop.f32.mrf.mxu0
      %v347 = vadd.f32 1e-05, %v346
      %v348 = vpop.f32.mrf.mxu0
      %349 = vdwg.mxu0
      %v350 = vrsqrt.pop %v347
      %v351 = vmul.f32 %v278, %v350
      %353 = vset.pattern.permute.xlu0 0
      %354 = vperm.xlu0 %353, %v202
      %v355 = vpop.permute.xlu0 %354
      %358 = vset.pattern.permute.xlu0 0
      %359 = vperm.xlu0 %358, %v203
      %v360 = vpop.permute.xlu0 %359
      %v363 = vsel %vm204, %v198, 0
      %v366 = vsel %vm204, %v199, 0
      %368 = vmatprep.subr.mxu0 0.0
      %369 = vmatpush1.msra.mxu0 0.0
      %370 = vmatprep.subr.mxu0 0.0
      %371 = vmatpush1.msra.mxu0 0.0
      %372 = vmatprep.subr.mxu0 0.0
      %373 = vmatpush1.msra.mxu0 0.0
      %374 = vmatprep.subr.mxu0 0.0
      %375 = vmatpush1.msra.mxu0 0.0
      %376 = vmatprep.subr.mxu0 0.0
      %377 = vmatpush1.msra.mxu0 0.0
      %378 = vmatprep.subr.mxu0 0.0
      %379 = vmatpush1.msra.mxu0 0.0
      %380 = vmatprep.subr.mxu0 0.0
      %381 = vmatpush1.msra.mxu0 0.0
      %382 = vmatprep.subr.mxu0 0.0
      %383 = vmatpush1.msra.mxu0 0.0
      %384 = vmatprep.subr.mxu0 0.0
      %385 = vmatpush1.msra.mxu0 0.0
      %386 = vmatprep.subr.mxu0 0.0
      %387 = vmatpush1.msra.mxu0 0.0
      %388 = vmatprep.subr.mxu0 0.0
      %389 = vmatpush1.msra.mxu0 0.0
      %390 = vmatprep.subr.mxu0 0.0
      %391 = vmatpush1.msra.mxu0 0.0
      %392 = vmatprep.subr.mxu0 0.0
      %393 = vmatpush1.msra.mxu0 0.0
      %394 = vmatprep.subr.mxu0 0.0
      %395 = vmatpush1.msra.mxu0 0.0
      %396 = vmatprep.subr.mxu0 0.0
      %397 = vmatpush1.msra.mxu0 0.0
      %398 = vmatprep.subr.mxu0 0.0
      %399 = vmatpush1.msra.mxu0 %v351
      %400 = vmatprep.subr.mxu0 0.0
      %401 = vmatpush2.msra.mxu0 0.0
      %402 = vmatprep.subr.mxu0 0.0
      %403 = vmatpush2.msra.mxu0 0.0
      %404 = vmatprep.subr.mxu0 0.0
      %405 = vmatpush2.msra.mxu0 0.0
      %406 = vmatprep.subr.mxu0 0.0
      %407 = vmatpush2.msra.mxu0 0.0
      %408 = vmatprep.subr.mxu0 0.0
      %409 = vmatpush2.msra.mxu0 0.0
      %410 = vmatprep.subr.mxu0 0.0
      %411 = vmatpush2.msra.mxu0 0.0
      %412 = vmatprep.subr.mxu0 0.0
      %413 = vmatpush2.msra.mxu0 0.0
      %414 = vmatprep.subr.mxu0 0.0
      %415 = vmatpush2.msra.mxu0 0.0
      %416 = vmatprep.subr.mxu0 0.0
      %417 = vmatpush2.msra.mxu0 0.0
      %418 = vmatprep.subr.mxu0 0.0
      %419 = vmatpush2.msra.mxu0 0.0
      %420 = vmatprep.subr.mxu0 0.0
      %421 = vmatpush2.msra.mxu0 0.0
      %422 = vmatprep.subr.mxu0 0.0
      %423 = vmatpush2.msra.mxu0 0.0
      %424 = vmatprep.subr.mxu0 0.0
      %425 = vmatpush2.msra.mxu0 0.0
      %426 = vmatprep.subr.mxu0 0.0
      %427 = vmatpush2.msra.mxu0 0.0
      %428 = vmatprep.subr.mxu0 0.0
      %429 = vmatpush2.msra.mxu0 0.0
      %430 = vmatprep.subr.mxu0 0.0
      %431 = vmatpush2.msra.mxu0 0.0
      %432 = vmatprep.mubr.f32.mxu0 0.0
      %433 = vmatmul.mubr.f32.gmra.mxu0 %v363
      %v434 = vpop.f32.mrf.mxu0
      %v435 = vadd.f32 %v355, %v434
      %v436 = vpop.f32.mrf.mxu0
      %437 = vmatprep.mubr.f32.mxu0 0.0
      %438 = vmatmul.mubr.f32.gmra.mxu0 %v366
      %v439 = vpop.f32.mrf.mxu0
      %v440 = vadd.f32 %v360, %v439
      %v441 = vpop.f32.mrf.mxu0
      %442 = vdwg.mxu0
      %v443 = vlaneseq
      %v444 = vand.u32 %v443, 127
      %vm445 = vcmp.ge.s32.totalorder %v444, 1
      %446 = vrot.lane.b32.xlu0 %v435, 1
      %v447 = vpop.permute.xlu0 %446
      %v448 = vsel %vm445, 1, 0
      %vm449 = vcmp.eq.s32.totalorder %v448, 1
      %v450 = vsel %vm449, %v447, 0.0
      %vm451 = vcmp.le.s32.totalorder %v444, 126
      %452 = vrot.lane.b32.xlu0 %v435, 127
      %v453 = vpop.permute.xlu0 %452
      %v454 = vsel %vm451, 1, 0
      %vm455 = vcmp.eq.s32.totalorder %v454, 1
      %v456 = vsel %vm455, %v453, 0.0
      %vm457 = vcmp.le.s32.totalorder %v444, 125
      %458 = vrot.lane.b32.xlu0 %v435, 126
      %v459 = vpop.permute.xlu0 %458
      %v460 = vsel %vm457, 1, 0
      %vm461 = vcmp.eq.s32.totalorder %v460, 1
      %v462 = vsel %vm461, %v459, 0.0
      %463 = vset.pattern.permute.xlu0 4
      %464 = vperm.xlu0 %463, %v202
      %v465 = vpop.permute.xlu0 %464
      %v467 = vmul.f32 %v465, %v450
      %468 = vset.pattern.permute.xlu0 5
      %469 = vperm.xlu0 %468, %v202
      %v470 = vpop.permute.xlu0 %469
      %v472 = vmul.f32 %v470, %v435
      %v473 = vadd.f32 %v467, %v472
      %474 = vset.pattern.permute.xlu0 6
      %475 = vperm.xlu0 %474, %v202
      %v476 = vpop.permute.xlu0 %475
      %v478 = vmul.f32 %v476, %v456
      %v479 = vadd.f32 %v473, %v478
      %480 = vset.pattern.permute.xlu0 7
      %481 = vperm.xlu0 %480, %v202
      %v482 = vpop.permute.xlu0 %481
      %v484 = vmul.f32 %v482, %v462
      %v485 = vadd.f32 %v479, %v484
      %486 = vset.pattern.permute.xlu0 2
      %487 = vperm.xlu0 %486, %v202
      %v488 = vpop.permute.xlu0 %487
      %v490 = vadd.f32 %v485, %v488
      %v491 = vmul.f32 %v490, 0.5
      %v492 = vmul.f32 %v490, 0.70710677
      %v493 = verf.f32.pop %v492
      %v494 = vadd.f32 %v493, 1.0
      %v495 = vmul.f32 %v491, %v494
      %496 = vset.pattern.permute.xlu0 1
      %497 = vperm.xlu0 %496, %v202
      %v498 = vpop.permute.xlu0 %497
      %v501 = vsel %vm204, %v200, 0
      %503 = vmatprep.subr.mxu0 0.0
      %504 = vmatpush1.msra.mxu0 0.0
      %505 = vmatprep.subr.mxu0 0.0
      %506 = vmatpush1.msra.mxu0 0.0
      %507 = vmatprep.subr.mxu0 0.0
      %508 = vmatpush1.msra.mxu0 0.0
      %509 = vmatprep.subr.mxu0 0.0
      %510 = vmatpush1.msra.mxu0 0.0
      %511 = vmatprep.subr.mxu0 0.0
      %512 = vmatpush1.msra.mxu0 0.0
      %513 = vmatprep.subr.mxu0 0.0
      %514 = vmatpush1.msra.mxu0 0.0
      %515 = vmatprep.subr.mxu0 0.0
      %516 = vmatpush1.msra.mxu0 0.0
      %517 = vmatprep.subr.mxu0 0.0
      %518 = vmatpush1.msra.mxu0 0.0
      %519 = vmatprep.subr.mxu0 0.0
      %520 = vmatpush1.msra.mxu0 0.0
      %521 = vmatprep.subr.mxu0 0.0
      %522 = vmatpush1.msra.mxu0 0.0
      %523 = vmatprep.subr.mxu0 0.0
      %524 = vmatpush1.msra.mxu0 0.0
      %525 = vmatprep.subr.mxu0 0.0
      %526 = vmatpush1.msra.mxu0 0.0
      %527 = vmatprep.subr.mxu0 0.0
      %528 = vmatpush1.msra.mxu0 0.0
      %529 = vmatprep.subr.mxu0 0.0
      %530 = vmatpush1.msra.mxu0 0.0
      %531 = vmatprep.subr.mxu0 0.0
      %532 = vmatpush1.msra.mxu0 0.0
      %533 = vmatprep.subr.mxu0 0.0
      %534 = vmatpush1.msra.mxu0 %v495
      %535 = vmatprep.subr.mxu0 0.0
      %536 = vmatpush2.msra.mxu0 0.0
      %537 = vmatprep.subr.mxu0 0.0
      %538 = vmatpush2.msra.mxu0 0.0
      %539 = vmatprep.subr.mxu0 0.0
      %540 = vmatpush2.msra.mxu0 0.0
      %541 = vmatprep.subr.mxu0 0.0
      %542 = vmatpush2.msra.mxu0 0.0
      %543 = vmatprep.subr.mxu0 0.0
      %544 = vmatpush2.msra.mxu0 0.0
      %545 = vmatprep.subr.mxu0 0.0
      %546 = vmatpush2.msra.mxu0 0.0
      %547 = vmatprep.subr.mxu0 0.0
      %548 = vmatpush2.msra.mxu0 0.0
      %549 = vmatprep.subr.mxu0 0.0
      %550 = vmatpush2.msra.mxu0 0.0
      %551 = vmatprep.subr.mxu0 0.0
      %552 = vmatpush2.msra.mxu0 0.0
      %553 = vmatprep.subr.mxu0 0.0
      %554 = vmatpush2.msra.mxu0 0.0
      %555 = vmatprep.subr.mxu0 0.0
      %556 = vmatpush2.msra.mxu0 0.0
      %557 = vmatprep.subr.mxu0 0.0
      %558 = vmatpush2.msra.mxu0 0.0
      %559 = vmatprep.subr.mxu0 0.0
      %560 = vmatpush2.msra.mxu0 0.0
      %561 = vmatprep.subr.mxu0 0.0
      %562 = vmatpush2.msra.mxu0 0.0
      %563 = vmatprep.subr.mxu0 0.0
      %564 = vmatpush2.msra.mxu0 0.0
      %565 = vmatprep.subr.mxu0 0.0
      %566 = vmatpush2.msra.mxu0 0.0
      %567 = vmatprep.mubr.f32.mxu0 0.0
      %568 = vmatmul.mubr.f32.gmra.mxu0 %v501
      %v569 = vpop.f32.mrf.mxu0
      %v570 = vadd.f32 %v498, %v569
      %v571 = vpop.f32.mrf.mxu0
      %572 = vdwg.mxu0
      %v573 = vmul.f32 %v570, 0.5
      %v574 = vmul.f32 %v570, 0.70710677
      %v575 = verf.f32.pop %v574
      %v576 = vadd.f32 %v575, 1.0
      %v577 = vmul.f32 %v573, %v576
      %v578 = vmax.f32 %v577, 0.0
      %v579 = vand.u32 2147483647, %v577
      %v580 = vsub.f32 0.0, %v579
      %v581 = vmul.f32 %v580, 1.442695
      %v582 = vpow.pop %v581
      %v583 = vadd.f32 %v582, 1.0
      %v584 = vlog2.pop %v583
      %v585 = vmul.f32 %v584, 0.6931472
      %v586 = vmul.f32 -0.5, %v582
      %v587 = vadd.f32 %v586, 1.0
      %v588 = vmul.f32 %v587, %v582
      %v589 = vand.u32 2147483647, %v582
      %vm590 = vcmp.lt.f32.partialorder %v589, 0.0004427343
      %v591 = vsel %vm590, %v588, %v585
      %v592 = vadd.f32 %v578, %v591
      %593 = vxpose.xlu0.b32.start [1/16] %v592, 128
      %594 = vxpose.xlu0.b32.cont [2/16] 0.0, 128
      %595 = vxpose.xlu0.b32.cont [3/16] 0.0, 128
      %596 = vxpose.xlu0.b32.cont [4/16] 0.0, 128
      %597 = vxpose.xlu0.b32.cont [5/16] 0.0, 128
      %598 = vxpose.xlu0.b32.cont [6/16] 0.0, 128
      %599 = vxpose.xlu0.b32.cont [7/16] 0.0, 128
      %600 = vxpose.xlu0.b32.cont [8/16] 0.0, 128
      %601 = vxpose.xlu0.b32.cont [9/16] 0.0, 128
      %602 = vxpose.xlu0.b32.cont [10/16] 0.0, 128
      %603 = vxpose.xlu0.b32.cont [11/16] 0.0, 128
      %604 = vxpose.xlu0.b32.cont [12/16] 0.0, 128
      %605 = vxpose.xlu0.b32.cont [13/16] 0.0, 128
      %606 = vxpose.xlu0.b32.cont [14/16] 0.0, 128
      %607 = vxpose.xlu0.b32.cont [15/16] 0.0, 128
      %608 = vxpose.xlu0.b32.end [16/16] 0.0, 128
      %v609 = vpop.trf.xlu0
      %v610 = vpop.trf.xlu0
      %v611 = vpop.trf.xlu0
      %v612 = vpop.trf.xlu0
      %v613 = vpop.trf.xlu0
      %v614 = vpop.trf.xlu0
      %v615 = vpop.trf.xlu0
      %v616 = vpop.trf.xlu0
      %v617 = vpop.trf.xlu0
      %v618 = vpop.trf.xlu0
      %v619 = vpop.trf.xlu0
      %v620 = vpop.trf.xlu0
      %v621 = vpop.trf.xlu0
      %v622 = vpop.trf.xlu0
      %v623 = vpop.trf.xlu0
      %v624 = vpop.trf.xlu0
      %v625 = vmul.f32 %v592, %v495
      %626 = vxpose.xlu0.b32.start [1/16] %v625, 128
      %627 = vxpose.xlu0.b32.cont [2/16] 0.0, 128
      %628 = vxpose.xlu0.b32.cont [3/16] 0.0, 128
      %629 = vxpose.xlu0.b32.cont [4/16] 0.0, 128
      %630 = vxpose.xlu0.b32.cont [5/16] 0.0, 128
      %631 = vxpose.xlu0.b32.cont [6/16] 0.0, 128
      %632 = vxpose.xlu0.b32.cont [7/16] 0.0, 128
      %633 = vxpose.xlu0.b32.cont [8/16] 0.0, 128
      %634 = vxpose.xlu0.b32.cont [9/16] 0.0, 128
      %635 = vxpose.xlu0.b32.cont [10/16] 0.0, 128
      %636 = vxpose.xlu0.b32.cont [11/16] 0.0, 128
      %637 = vxpose.xlu0.b32.cont [12/16] 0.0, 128
      %638 = vxpose.xlu0.b32.cont [13/16] 0.0, 128
      %639 = vxpose.xlu0.b32.cont [14/16] 0.0, 128
      %640 = vxpose.xlu0.b32.cont [15/16] 0.0, 128
      %641 = vxpose.xlu0.b32.end [16/16] 0.0, 128
      %v642 = vpop.trf.xlu0
      %v643 = vpop.trf.xlu0
      %v644 = vpop.trf.xlu0
      %v645 = vpop.trf.xlu0
      %v646 = vpop.trf.xlu0
      %v647 = vpop.trf.xlu0
      %v648 = vpop.trf.xlu0
      %v649 = vpop.trf.xlu0
      %v650 = vpop.trf.xlu0
      %v651 = vpop.trf.xlu0
      %v652 = vpop.trf.xlu0
      %v653 = vpop.trf.xlu0
      %v654 = vpop.trf.xlu0
      %v655 = vpop.trf.xlu0
      %v656 = vpop.trf.xlu0
      %v657 = vpop.trf.xlu0
      %v659 = vsel %vm204, %v609, 0
      %v662 = vsel %vm204, %v610, 0
      %v665 = vsel %vm204, %v611, 0
      %v668 = vsel %vm204, %v612, 0
      %v671 = vsel %vm204, %v613, 0
      %v674 = vsel %vm204, %v614, 0
      %v677 = vsel %vm204, %v615, 0
      %v680 = vsel %vm204, %v616, 0
      %v683 = vsel %vm204, %v617, 0
      %v686 = vsel %vm204, %v618, 0
      %v689 = vsel %vm204, %v619, 0
      %v692 = vsel %vm204, %v620, 0
      %v695 = vsel %vm204, %v621, 0
      %v698 = vsel %vm204, %v622, 0
      %v701 = vsel %vm204, %v623, 0
      %v704 = vsel %vm204, %v624, 0
      %706 = vmatprep.subr.mxu0 0.0
      %707 = vmatpush1.msra.mxu0 0.0
      %708 = vmatprep.subr.mxu0 0.0
      %709 = vmatpush1.msra.mxu0 0.0
      %710 = vmatprep.subr.mxu0 0.0
      %711 = vmatpush1.msra.mxu0 0.0
      %712 = vmatprep.subr.mxu0 0.0
      %713 = vmatpush1.msra.mxu0 0.0
      %714 = vmatprep.subr.mxu0 0.0
      %715 = vmatpush1.msra.mxu0 0.0
      %716 = vmatprep.subr.mxu0 0.0
      %717 = vmatpush1.msra.mxu0 0.0
      %718 = vmatprep.subr.mxu0 0.0
      %719 = vmatpush1.msra.mxu0 0.0
      %720 = vmatprep.subr.mxu0 0.0
      %721 = vmatpush1.msra.mxu0 0.0
      %722 = vmatprep.subr.mxu0 0.0
      %723 = vmatpush1.msra.mxu0 0.0
      %724 = vmatprep.subr.mxu0 0.0
      %725 = vmatpush1.msra.mxu0 0.0
      %726 = vmatprep.subr.mxu0 0.0
      %727 = vmatpush1.msra.mxu0 0.0
      %728 = vmatprep.subr.mxu0 0.0
      %729 = vmatpush1.msra.mxu0 0.0
      %730 = vmatprep.subr.mxu0 0.0
      %731 = vmatpush1.msra.mxu0 0.0
      %732 = vmatprep.subr.mxu0 0.0
      %733 = vmatpush1.msra.mxu0 0.0
      %734 = vmatprep.subr.mxu0 0.0
      %735 = vmatpush1.msra.mxu0 0.0
      %736 = vmatprep.subr.mxu0 0.0
      %737 = vmatpush1.msra.mxu0 %v194
      %738 = vmatprep.subr.mxu0 0.0
      %739 = vmatpush2.msra.mxu0 0.0
      %740 = vmatprep.subr.mxu0 0.0
      %741 = vmatpush2.msra.mxu0 0.0
      %742 = vmatprep.subr.mxu0 0.0
      %743 = vmatpush2.msra.mxu0 0.0
      %744 = vmatprep.subr.mxu0 0.0
      %745 = vmatpush2.msra.mxu0 0.0
      %746 = vmatprep.subr.mxu0 0.0
      %747 = vmatpush2.msra.mxu0 0.0
      %748 = vmatprep.subr.mxu0 0.0
      %749 = vmatpush2.msra.mxu0 0.0
      %750 = vmatprep.subr.mxu0 0.0
      %751 = vmatpush2.msra.mxu0 0.0
      %752 = vmatprep.subr.mxu0 0.0
      %753 = vmatpush2.msra.mxu0 0.0
      %754 = vmatprep.subr.mxu0 0.0
      %755 = vmatpush2.msra.mxu0 0.0
      %756 = vmatprep.subr.mxu0 0.0
      %757 = vmatpush2.msra.mxu0 0.0
      %758 = vmatprep.subr.mxu0 0.0
      %759 = vmatpush2.msra.mxu0 0.0
      %760 = vmatprep.subr.mxu0 0.0
      %761 = vmatpush2.msra.mxu0 0.0
      %762 = vmatprep.subr.mxu0 0.0
      %763 = vmatpush2.msra.mxu0 0.0
      %764 = vmatprep.subr.mxu0 0.0
      %765 = vmatpush2.msra.mxu0 0.0
      %766 = vmatprep.subr.mxu0 0.0
      %767 = vmatpush2.msra.mxu0 0.0
      %768 = vmatprep.subr.mxu0 0.0
      %769 = vmatpush2.msra.mxu0 0.0
      %770 = vmatprep.mubr.f32.mxu0 0.0
      %771 = vmatmul.mubr.f32.gmra.mxu0 %v659
      %v772 = vpop.f32.mrf.mxu0
      %v773 = vadd.f32 0.0, %v772
      %v774 = vpop.f32.mrf.mxu0
      %775 = vmatprep.mubr.f32.mxu0 0.0
      %776 = vmatmul.mubr.f32.gmra.mxu0 %v662
      %v777 = vpop.f32.mrf.mxu0
      %v778 = vadd.f32 0.0, %v777
      %v779 = vpop.f32.mrf.mxu0
      %780 = vmatprep.mubr.f32.mxu0 0.0
      %781 = vmatmul.mubr.f32.gmra.mxu0 %v665
      %v782 = vpop.f32.mrf.mxu0
      %v783 = vadd.f32 0.0, %v782
      %v784 = vpop.f32.mrf.mxu0
      %785 = vmatprep.mubr.f32.mxu0 0.0
      %786 = vmatmul.mubr.f32.gmra.mxu0 %v668
      %v787 = vpop.f32.mrf.mxu0
      %v788 = vadd.f32 0.0, %v787
      %v789 = vpop.f32.mrf.mxu0
      %790 = vmatprep.mubr.f32.mxu0 0.0
      %791 = vmatmul.mubr.f32.gmra.mxu0 %v671
      %v792 = vpop.f32.mrf.mxu0
      %v793 = vadd.f32 0.0, %v792
      %v794 = vpop.f32.mrf.mxu0
      %795 = vmatprep.mubr.f32.mxu0 0.0
      %796 = vmatmul.mubr.f32.gmra.mxu0 %v674
      %v797 = vpop.f32.mrf.mxu0
      %v798 = vadd.f32 0.0, %v797
      %v799 = vpop.f32.mrf.mxu0
      %800 = vmatprep.mubr.f32.mxu0 0.0
      %801 = vmatmul.mubr.f32.gmra.mxu0 %v677
      %v802 = vpop.f32.mrf.mxu0
      %v803 = vadd.f32 0.0, %v802
      %v804 = vpop.f32.mrf.mxu0
      %805 = vmatprep.mubr.f32.mxu0 0.0
      %806 = vmatmul.mubr.f32.gmra.mxu0 %v680
      %v807 = vpop.f32.mrf.mxu0
      %v808 = vadd.f32 0.0, %v807
      %v809 = vpop.f32.mrf.mxu0
      %810 = vmatprep.mubr.f32.mxu0 0.0
      %811 = vmatmul.mubr.f32.gmra.mxu0 %v683
      %v812 = vpop.f32.mrf.mxu0
      %v813 = vadd.f32 0.0, %v812
      %v814 = vpop.f32.mrf.mxu0
      %815 = vmatprep.mubr.f32.mxu0 0.0
      %816 = vmatmul.mubr.f32.gmra.mxu0 %v686
      %v817 = vpop.f32.mrf.mxu0
      %v818 = vadd.f32 0.0, %v817
      %v819 = vpop.f32.mrf.mxu0
      %820 = vmatprep.mubr.f32.mxu0 0.0
      %821 = vmatmul.mubr.f32.gmra.mxu0 %v689
      %v822 = vpop.f32.mrf.mxu0
      %v823 = vadd.f32 0.0, %v822
      %v824 = vpop.f32.mrf.mxu0
      %825 = vmatprep.mubr.f32.mxu0 0.0
      %826 = vmatmul.mubr.f32.gmra.mxu0 %v692
      %v827 = vpop.f32.mrf.mxu0
      %v828 = vadd.f32 0.0, %v827
      %v829 = vpop.f32.mrf.mxu0
      %830 = vmatprep.mubr.f32.mxu0 0.0
      %831 = vmatmul.mubr.f32.gmra.mxu0 %v695
      %v832 = vpop.f32.mrf.mxu0
      %v833 = vadd.f32 0.0, %v832
      %v834 = vpop.f32.mrf.mxu0
      %835 = vmatprep.mubr.f32.mxu0 0.0
      %836 = vmatmul.mubr.f32.gmra.mxu0 %v698
      %v837 = vpop.f32.mrf.mxu0
      %v838 = vadd.f32 0.0, %v837
      %v839 = vpop.f32.mrf.mxu0
      %840 = vmatprep.mubr.f32.mxu0 0.0
      %841 = vmatmul.mubr.f32.gmra.mxu0 %v701
      %v842 = vpop.f32.mrf.mxu0
      %v843 = vadd.f32 0.0, %v842
      %v844 = vpop.f32.mrf.mxu0
      %845 = vmatprep.mubr.f32.mxu0 0.0
      %846 = vmatmul.mubr.f32.gmra.mxu0 %v704
      %v847 = vpop.f32.mrf.mxu0
      %v848 = vadd.f32 0.0, %v847
      %v849 = vpop.f32.mrf.mxu0
      %850 = vdwg.mxu0
      %v851 = vmul.f32 %v773, 1.442695
      %v852 = vpow.pop %v851
      %v853 = vmul.f32 %v778, 1.442695
      %v854 = vpow.pop %v853
      %v855 = vmul.f32 %v783, 1.442695
      %v856 = vpow.pop %v855
      %v857 = vmul.f32 %v788, 1.442695
      %v858 = vpow.pop %v857
      %v859 = vmul.f32 %v793, 1.442695
      %v860 = vpow.pop %v859
      %v861 = vmul.f32 %v798, 1.442695
      %v862 = vpow.pop %v861
      %v863 = vmul.f32 %v803, 1.442695
      %v864 = vpow.pop %v863
      %v865 = vmul.f32 %v808, 1.442695
      %v866 = vpow.pop %v865
      %v867 = vmul.f32 %v813, 1.442695
      %v868 = vpow.pop %v867
      %v869 = vmul.f32 %v818, 1.442695
      %v870 = vpow.pop %v869
      %v871 = vmul.f32 %v823, 1.442695
      %v872 = vpow.pop %v871
      %v873 = vmul.f32 %v828, 1.442695
      %v874 = vpow.pop %v873
      %v875 = vmul.f32 %v833, 1.442695
      %v876 = vpow.pop %v875
      %v877 = vmul.f32 %v838, 1.442695
      %v878 = vpow.pop %v877
      %v879 = vmul.f32 %v843, 1.442695
      %v880 = vpow.pop %v879
      %v881 = vmul.f32 %v848, 1.442695
      %v882 = vpow.pop %v881
      %883 = vst [vmem:[#allocation2] sm:$0xff] %v852
      %884 = vst [vmem:[#allocation2 + $0x8] sm:$0xff] %v854
      %885 = vst [vmem:[#allocation2 + $0x10] sm:$0xff] %v856
      %886 = vst [vmem:[#allocation2 + $0x18] sm:$0xff] %v858
      %887 = vst [vmem:[#allocation2 + $0x20] sm:$0xff] %v860
      %888 = vst [vmem:[#allocation2 + $0x28] sm:$0xff] %v862
      %889 = vst [vmem:[#allocation2 + $0x30] sm:$0xff] %v864
      %890 = vst [vmem:[#allocation2 + $0x38] sm:$0xff] %v866
      %891 = vst [vmem:[#allocation2 + $0x40] sm:$0xff] %v868
      %892 = vst [vmem:[#allocation2 + $0x48] sm:$0xff] %v870
      %893 = vst [vmem:[#allocation2 + $0x50] sm:$0xff] %v872
      %894 = vst [vmem:[#allocation2 + $0x58] sm:$0xff] %v874
      %895 = vst [vmem:[#allocation2 + $0x60] sm:$0xff] %v876
      %896 = vst [vmem:[#allocation2 + $0x68] sm:$0xff] %v878
      %897 = vst [vmem:[#allocation2 + $0x70] sm:$0xff] %v880
      %898 = vst [vmem:[#allocation2 + $0x78] sm:$0xff] %v882
      %v900 = vsel %vm204, %v642, 0
      %v903 = vsel %vm204, %v643, 0
      %v906 = vsel %vm204, %v644, 0
      %v909 = vsel %vm204, %v645, 0
      %v912 = vsel %vm204, %v646, 0
      %v915 = vsel %vm204, %v647, 0
      %v918 = vsel %vm204, %v648, 0
      %v921 = vsel %vm204, %v649, 0
      %v924 = vsel %vm204, %v650, 0
      %v927 = vsel %vm204, %v651, 0
      %v930 = vsel %vm204, %v652, 0
      %v933 = vsel %vm204, %v653, 0
      %v936 = vsel %vm204, %v654, 0
      %v939 = vsel %vm204, %v655, 0
      %v942 = vsel %vm204, %v656, 0
      %v945 = vsel %vm204, %v657, 0
      %947 = vmatprep.subr.mxu0 0.0
      %948 = vmatpush1.msra.mxu0 0.0
      %949 = vmatprep.subr.mxu0 0.0
      %950 = vmatpush1.msra.mxu0 0.0
      %951 = vmatprep.subr.mxu0 0.0
      %952 = vmatpush1.msra.mxu0 0.0
      %953 = vmatprep.subr.mxu0 0.0
      %954 = vmatpush1.msra.mxu0 0.0
      %955 = vmatprep.subr.mxu0 0.0
      %956 = vmatpush1.msra.mxu0 0.0
      %957 = vmatprep.subr.mxu0 0.0
      %958 = vmatpush1.msra.mxu0 0.0
      %959 = vmatprep.subr.mxu0 0.0
      %960 = vmatpush1.msra.mxu0 0.0
      %961 = vmatprep.subr.mxu0 0.0
      %962 = vmatpush1.msra.mxu0 0.0
      %963 = vmatprep.subr.mxu0 0.0
      %964 = vmatpush1.msra.mxu0 0.0
      %965 = vmatprep.subr.mxu0 0.0
      %966 = vmatpush1.msra.mxu0 0.0
      %967 = vmatprep.subr.mxu0 0.0
      %968 = vmatpush1.msra.mxu0 0.0
      %969 = vmatprep.subr.mxu0 0.0
      %970 = vmatpush1.msra.mxu0 0.0
      %971 = vmatprep.subr.mxu0 0.0
      %972 = vmatpush1.msra.mxu0 0.0
      %973 = vmatprep.subr.mxu0 0.0
      %974 = vmatpush1.msra.mxu0 0.0
      %975 = vmatprep.subr.mxu0 0.0
      %976 = vmatpush1.msra.mxu0 0.0
      %977 = vmatprep.subr.mxu0 0.0
      %978 = vmatpush1.msra.mxu0 %v195
      %979 = vmatprep.subr.mxu0 0.0
      %980 = vmatpush2.msra.mxu0 0.0
      %981 = vmatprep.subr.mxu0 0.0
      %982 = vmatpush2.msra.mxu0 0.0
      %983 = vmatprep.subr.mxu0 0.0
      %984 = vmatpush2.msra.mxu0 0.0
      %985 = vmatprep.subr.mxu0 0.0
      %986 = vmatpush2.msra.mxu0 0.0
      %987 = vmatprep.subr.mxu0 0.0
      %988 = vmatpush2.msra.mxu0 0.0
      %989 = vmatprep.subr.mxu0 0.0
      %990 = vmatpush2.msra.mxu0 0.0
      %991 = vmatprep.subr.mxu0 0.0
      %992 = vmatpush2.msra.mxu0 0.0
      %993 = vmatprep.subr.mxu0 0.0
      %994 = vmatpush2.msra.mxu0 0.0
      %995 = vmatprep.subr.mxu0 0.0
      %996 = vmatpush2.msra.mxu0 0.0
      %997 = vmatprep.subr.mxu0 0.0
      %998 = vmatpush2.msra.mxu0 0.0
      %999 = vmatprep.subr.mxu0 0.0
      %1000 = vmatpush2.msra.mxu0 0.0
      %1001 = vmatprep.subr.mxu0 0.0
      %1002 = vmatpush2.msra.mxu0 0.0
      %1003 = vmatprep.subr.mxu0 0.0
      %1004 = vmatpush2.msra.mxu0 0.0
      %1005 = vmatprep.subr.mxu0 0.0
      %1006 = vmatpush2.msra.mxu0 0.0
      %1007 = vmatprep.subr.mxu0 0.0
      %1008 = vmatpush2.msra.mxu0 0.0
      %1009 = vmatprep.subr.mxu0 0.0
      %1010 = vmatpush2.msra.mxu0 0.0
      %1011 = vmatprep.mubr.f32.mxu0 0.0
      %1012 = vmatmul.mubr.f32.gmra.mxu0 %v900
      %v1013 = vpop.f32.mrf.mxu0
      %v1014 = vadd.f32 0.0, %v1013
      %v1015 = vpop.f32.mrf.mxu0
      %1016 = vmatprep.mubr.f32.mxu0 0.0
      %1017 = vmatmul.mubr.f32.gmra.mxu0 %v903
      %v1018 = vpop.f32.mrf.mxu0
      %v1019 = vadd.f32 0.0, %v1018
      %v1020 = vpop.f32.mrf.mxu0
      %1021 = vmatprep.mubr.f32.mxu0 0.0
      %1022 = vmatmul.mubr.f32.gmra.mxu0 %v906
      %v1023 = vpop.f32.mrf.mxu0
      %v1024 = vadd.f32 0.0, %v1023
      %v1025 = vpop.f32.mrf.mxu0
      %1026 = vmatprep.mubr.f32.mxu0 0.0
      %1027 = vmatmul.mubr.f32.gmra.mxu0 %v909
      %v1028 = vpop.f32.mrf.mxu0
      %v1029 = vadd.f32 0.0, %v1028
      %v1030 = vpop.f32.mrf.mxu0
      %1031 = vmatprep.mubr.f32.mxu0 0.0
      %1032 = vmatmul.mubr.f32.gmra.mxu0 %v912
      %v1033 = vpop.f32.mrf.mxu0
      %v1034 = vadd.f32 0.0, %v1033
      %v1035 = vpop.f32.mrf.mxu0
      %1036 = vmatprep.mubr.f32.mxu0 0.0
      %1037 = vmatmul.mubr.f32.gmra.mxu0 %v915
      %v1038 = vpop.f32.mrf.mxu0
      %v1039 = vadd.f32 0.0, %v1038
      %v1040 = vpop.f32.mrf.mxu0
      %1041 = vmatprep.mubr.f32.mxu0 0.0
      %1042 = vmatmul.mubr.f32.gmra.mxu0 %v918
      %v1043 = vpop.f32.mrf.mxu0
      %v1044 = vadd.f32 0.0, %v1043
      %v1045 = vpop.f32.mrf.mxu0
      %1046 = vmatprep.mubr.f32.mxu0 0.0
      %1047 = vmatmul.mubr.f32.gmra.mxu0 %v921
      %v1048 = vpop.f32.mrf.mxu0
      %v1049 = vadd.f32 0.0, %v1048
      %v1050 = vpop.f32.mrf.mxu0
      %1051 = vmatprep.mubr.f32.mxu0 0.0
      %1052 = vmatmul.mubr.f32.gmra.mxu0 %v924
      %v1053 = vpop.f32.mrf.mxu0
      %v1054 = vadd.f32 0.0, %v1053
      %v1055 = vpop.f32.mrf.mxu0
      %1056 = vmatprep.mubr.f32.mxu0 0.0
      %1057 = vmatmul.mubr.f32.gmra.mxu0 %v927
      %v1058 = vpop.f32.mrf.mxu0
      %v1059 = vadd.f32 0.0, %v1058
      %v1060 = vpop.f32.mrf.mxu0
      %1061 = vmatprep.mubr.f32.mxu0 0.0
      %1062 = vmatmul.mubr.f32.gmra.mxu0 %v930
      %v1063 = vpop.f32.mrf.mxu0
      %v1064 = vadd.f32 0.0, %v1063
      %v1065 = vpop.f32.mrf.mxu0
      %1066 = vmatprep.mubr.f32.mxu0 0.0
      %1067 = vmatmul.mubr.f32.gmra.mxu0 %v933
      %v1068 = vpop.f32.mrf.mxu0
      %v1069 = vadd.f32 0.0, %v1068
      %v1070 = vpop.f32.mrf.mxu0
      %1071 = vmatprep.mubr.f32.mxu0 0.0
      %1072 = vmatmul.mubr.f32.gmra.mxu0 %v936
      %v1073 = vpop.f32.mrf.mxu0
      %v1074 = vadd.f32 0.0, %v1073
      %v1075 = vpop.f32.mrf.mxu0
      %1076 = vmatprep.mubr.f32.mxu0 0.0
      %1077 = vmatmul.mubr.f32.gmra.mxu0 %v939
      %v1078 = vpop.f32.mrf.mxu0
      %v1079 = vadd.f32 0.0, %v1078
      %v1080 = vpop.f32.mrf.mxu0
      %1081 = vmatprep.mubr.f32.mxu0 0.0
      %1082 = vmatmul.mubr.f32.gmra.mxu0 %v942
      %v1083 = vpop.f32.mrf.mxu0
      %v1084 = vadd.f32 0.0, %v1083
      %v1085 = vpop.f32.mrf.mxu0
      %1086 = vmatprep.mubr.f32.mxu0 0.0
      %1087 = vmatmul.mubr.f32.gmra.mxu0 %v945
      %v1088 = vpop.f32.mrf.mxu0
      %v1089 = vadd.f32 0.0, %v1088
      %v1090 = vpop.f32.mrf.mxu0
      %1091 = vdwg.mxu0
      %1092 = vst [vmem:[#allocation3] sm:$0xff] %v1014
      %1093 = vst [vmem:[#allocation3 + $0x8] sm:$0xff] %v1019
      %1094 = vst [vmem:[#allocation3 + $0x10] sm:$0xff] %v1024
      %1095 = vst [vmem:[#allocation3 + $0x18] sm:$0xff] %v1029
      %1096 = vst [vmem:[#allocation3 + $0x20] sm:$0xff] %v1034
      %1097 = vst [vmem:[#allocation3 + $0x28] sm:$0xff] %v1039
      %1098 = vst [vmem:[#allocation3 + $0x30] sm:$0xff] %v1044
      %1099 = vst [vmem:[#allocation3 + $0x38] sm:$0xff] %v1049
      %1100 = vst [vmem:[#allocation3 + $0x40] sm:$0xff] %v1054
      %1101 = vst [vmem:[#allocation3 + $0x48] sm:$0xff] %v1059
      %1102 = vst [vmem:[#allocation3 + $0x50] sm:$0xff] %v1064
      %1103 = vst [vmem:[#allocation3 + $0x58] sm:$0xff] %v1069
      %1104 = vst [vmem:[#allocation3 + $0x60] sm:$0xff] %v1074
      %1105 = vst [vmem:[#allocation3 + $0x68] sm:$0xff] %v1079
      %1106 = vst [vmem:[#allocation3 + $0x70] sm:$0xff] %v1084
      %1107 = vst [vmem:[#allocation3 + $0x78] sm:$0xff] %v1089
      loop: start=0, step=1, limit=8
      $region37: #{mamba_block_forward.1} parent=35 // loop_pre_header
        _
      $region38: #{mamba_block_forward.1} parent=35 // loop_header
        %s1109 = sphi 0, %s1113
        %p1110 = scmp.ge.s32.totalorder %s1109, 8
        %v1114 = vphi 0.0, %v1201
      $region39: #{mamba_block_forward.1} parent=35 // loop_header_branch
        %1112 = sbr.rel (%p1110) target = $region43
      $region40: #{mamba_block_forward.1} parent=35 // loop_body
        %s1115 = smul.u32 %s1109, 16
        %s1116 = scalar_lea.vmem [#allocation2], %s1115
        %v1117 = vld [vmem:[%s1116] sm:$0xff]
        %v1118 = vld [vmem:[%s1116 + $0x8] sm:$0xff]
        %s1119 = scalar_lea.vmem [#allocation3], %s1115
        %v1120 = vld [vmem:[%s1119] sm:$0xff]
        %v1121 = vld [vmem:[%s1119 + $0x8] sm:$0xff]
        %v1123 = vrot.slane %v1114, 7
        %v1125 = vmul.f32 %v1117, %v1123
        %v1126 = vadd.f32 %v1125, %v1120
        %v1128 = vrot.slane %v1126, 7
        %v1130 = vmul.f32 %v1117, %v1128
        %v1131 = vadd.f32 %v1130, %v1120
        %v1133 = vrot.slane %v1131, 7
        %v1135 = vmul.f32 %v1117, %v1133
        %v1136 = vadd.f32 %v1135, %v1120
        %v1138 = vrot.slane %v1136, 7
        %v1140 = vmul.f32 %v1117, %v1138
        %v1141 = vadd.f32 %v1140, %v1120
        %v1143 = vrot.slane %v1141, 7
        %v1145 = vmul.f32 %v1117, %v1143
        %v1146 = vadd.f32 %v1145, %v1120
        %v1148 = vrot.slane %v1146, 7
        %v1150 = vmul.f32 %v1117, %v1148
        %v1151 = vadd.f32 %v1150, %v1120
        %v1153 = vrot.slane %v1151, 7
        %v1155 = vmul.f32 %v1117, %v1153
        %v1156 = vadd.f32 %v1155, %v1120
        %v1158 = vrot.slane %v1156, 7
        %v1160 = vmul.f32 %v1117, %v1158
        %v1161 = vadd.f32 %v1160, %v1120
        %v1163 = vrot.slane %v1161, 7
        %v1165 = vmul.f32 %v1118, %v1163
        %v1166 = vadd.f32 %v1165, %v1121
        %v1168 = vrot.slane %v1166, 7
        %v1170 = vmul.f32 %v1118, %v1168
        %v1171 = vadd.f32 %v1170, %v1121
        %v1173 = vrot.slane %v1171, 7
        %v1175 = vmul.f32 %v1118, %v1173
        %v1176 = vadd.f32 %v1175, %v1121
        %v1178 = vrot.slane %v1176, 7
        %v1180 = vmul.f32 %v1118, %v1178
        %v1181 = vadd.f32 %v1180, %v1121
        %v1183 = vrot.slane %v1181, 7
        %v1185 = vmul.f32 %v1118, %v1183
        %v1186 = vadd.f32 %v1185, %v1121
        %v1188 = vrot.slane %v1186, 7
        %v1190 = vmul.f32 %v1118, %v1188
        %v1191 = vadd.f32 %v1190, %v1121
        %v1193 = vrot.slane %v1191, 7
        %v1195 = vmul.f32 %v1118, %v1193
        %v1196 = vadd.f32 %v1195, %v1121
        %v1198 = vrot.slane %v1196, 7
        %v1200 = vmul.f32 %v1118, %v1198
        %v1201 = vadd.f32 %v1200, %v1121
        %vm1202 = vcmask 1040384
        %v1203 = vsel %vm1202, %v1126, %v1131
        %vm1204 = vcmask 1041408
        %v1205 = vsel %vm1204, %v1203, %v1136
        %vm1206 = vcmask 1042432
        %v1207 = vsel %vm1206, %v1205, %v1141
        %vm1208 = vcmask 1043456
        %v1209 = vsel %vm1208, %v1207, %v1146
        %vm1210 = vcmask 1044480
        %v1211 = vsel %vm1210, %v1209, %v1151
        %vm1212 = vcmask 1045504
        %v1213 = vsel %vm1212, %v1211, %v1156
        %vm1214 = vcmask 1046528
        %v1215 = vsel %vm1214, %v1213, %v1161
        %v1216 = vsel %vm1202, %v1166, %v1171
        %v1217 = vsel %vm1204, %v1216, %v1176
        %v1218 = vsel %vm1206, %v1217, %v1181
        %v1219 = vsel %vm1208, %v1218, %v1186
        %v1220 = vsel %vm1210, %v1219, %v1191
        %v1221 = vsel %vm1212, %v1220, %v1196
        %v1222 = vsel %vm1214, %v1221, %v1201
        %s1223 = scalar_lea.vmem [#allocation4], %s1115
        %1224 = vst [vmem:[%s1223] sm:$0xff] %v1215
        %1225 = vst [vmem:[%s1223 + $0x8] sm:$0xff] %v1222
      $region41: #{mamba_block_forward.1} parent=35 // loop_footer
        %s1113 = sadd.s32 1, %s1109
      $region42: #{mamba_block_forward.1} parent=35 // loop_footer_branch
        %1108 = sbr.rel target = $region38
      $region43: #{mamba_block_forward.1} parent=35 // loop_exit
        _
      %v1226 = vld [vmem:[#allocation4] sm:$0xff]
      %v1227 = vld [vmem:[#allocation4 + $0x8] sm:$0xff]
      %v1228 = vld [vmem:[#allocation4 + $0x10] sm:$0xff]
      %v1229 = vld [vmem:[#allocation4 + $0x18] sm:$0xff]
      %v1230 = vld [vmem:[#allocation4 + $0x20] sm:$0xff]
      %v1231 = vld [vmem:[#allocation4 + $0x28] sm:$0xff]
      %v1232 = vld [vmem:[#allocation4 + $0x30] sm:$0xff]
      %v1233 = vld [vmem:[#allocation4 + $0x38] sm:$0xff]
      %v1234 = vld [vmem:[#allocation4 + $0x40] sm:$0xff]
      %v1235 = vld [vmem:[#allocation4 + $0x48] sm:$0xff]
      %v1236 = vld [vmem:[#allocation4 + $0x50] sm:$0xff]
      %v1237 = vld [vmem:[#allocation4 + $0x58] sm:$0xff]
      %v1238 = vld [vmem:[#allocation4 + $0x60] sm:$0xff]
      %v1239 = vld [vmem:[#allocation4 + $0x68] sm:$0xff]
      %v1240 = vld [vmem:[#allocation4 + $0x70] sm:$0xff]
      %v1241 = vld [vmem:[#allocation4 + $0x78] sm:$0xff]
      %v1243 = vsel %vm204, %v201, 0
      %1245 = vmatprep.subr.mxu0 0.0
      %1246 = vmatpush1.msra.mxu0 0.0
      %1247 = vmatprep.subr.mxu0 0.0
      %1248 = vmatpush1.msra.mxu0 0.0
      %1249 = vmatprep.subr.mxu0 0.0
      %1250 = vmatpush1.msra.mxu0 0.0
      %1251 = vmatprep.subr.mxu0 0.0
      %1252 = vmatpush1.msra.mxu0 0.0
      %1253 = vmatprep.subr.mxu0 0.0
      %1254 = vmatpush1.msra.mxu0 0.0
      %1255 = vmatprep.subr.mxu0 0.0
      %1256 = vmatpush1.msra.mxu0 0.0
      %1257 = vmatprep.subr.mxu0 0.0
      %1258 = vmatpush1.msra.mxu0 0.0
      %1259 = vmatprep.subr.mxu0 0.0
      %1260 = vmatpush1.msra.mxu0 0.0
      %1261 = vmatprep.subr.mxu0 0.0
      %1262 = vmatpush1.msra.mxu0 0.0
      %1263 = vmatprep.subr.mxu0 0.0
      %1264 = vmatpush1.msra.mxu0 0.0
      %1265 = vmatprep.subr.mxu0 0.0
      %1266 = vmatpush1.msra.mxu0 0.0
      %1267 = vmatprep.subr.mxu0 0.0
      %1268 = vmatpush1.msra.mxu0 0.0
      %1269 = vmatprep.subr.mxu0 0.0
      %1270 = vmatpush1.msra.mxu0 0.0
      %1271 = vmatprep.subr.mxu0 0.0
      %1272 = vmatpush1.msra.mxu0 0.0
      %1273 = vmatprep.subr.mxu0 0.0
      %1274 = vmatpush1.msra.mxu0 0.0
      %1275 = vmatprep.subr.mxu0 0.0
      %1276 = vmatpush1.msra.mxu0 %v495
      %1277 = vmatprep.subr.mxu0 0.0
      %1278 = vmatpush2.msra.mxu0 0.0
      %1279 = vmatprep.subr.mxu0 0.0
      %1280 = vmatpush2.msra.mxu0 0.0
      %1281 = vmatprep.subr.mxu0 0.0
      %1282 = vmatpush2.msra.mxu0 0.0
      %1283 = vmatprep.subr.mxu0 0.0
      %1284 = vmatpush2.msra.mxu0 0.0
      %1285 = vmatprep.subr.mxu0 0.0
      %1286 = vmatpush2.msra.mxu0 0.0
      %1287 = vmatprep.subr.mxu0 0.0
      %1288 = vmatpush2.msra.mxu0 0.0
      %1289 = vmatprep.subr.mxu0 0.0
      %1290 = vmatpush2.msra.mxu0 0.0
      %1291 = vmatprep.subr.mxu0 0.0
      %1292 = vmatpush2.msra.mxu0 0.0
      %1293 = vmatprep.subr.mxu0 0.0
      %1294 = vmatpush2.msra.mxu0 0.0
      %1295 = vmatprep.subr.mxu0 0.0
      %1296 = vmatpush2.msra.mxu0 0.0
      %1297 = vmatprep.subr.mxu0 0.0
      %1298 = vmatpush2.msra.mxu0 0.0
      %1299 = vmatprep.subr.mxu0 0.0
      %1300 = vmatpush2.msra.mxu0 0.0
      %1301 = vmatprep.subr.mxu0 0.0
      %1302 = vmatpush2.msra.mxu0 0.0
      %1303 = vmatprep.subr.mxu0 0.0
      %1304 = vmatpush2.msra.mxu0 0.0
      %1305 = vmatprep.subr.mxu0 0.0
      %1306 = vmatpush2.msra.mxu0 0.0
      %1307 = vmatprep.subr.mxu0 0.0
      %1308 = vmatpush2.msra.mxu0 0.0
      %1309 = vmatprep.mubr.f32.mxu0 0.0
      %1310 = vmatmul.mubr.f32.gmra.mxu0 %v1243
      %v1311 = vpop.f32.mrf.mxu0
      %v1312 = vadd.f32 0.0, %v1311
      %v1313 = vpop.f32.mrf.mxu0
      %1314 = vdwg.mxu0
      %1315 = vmatprep.subr.mxu0 0.0
      %1316 = vmatpush1.xpose.msra.mxu0 %v1241
      %1317 = vmatprep.subr.mxu0 0.0
      %1318 = vmatpush1.xpose.msra.mxu0 %v1240
      %1319 = vmatprep.subr.mxu0 0.0
      %1320 = vmatpush1.xpose.msra.mxu0 %v1239
      %1321 = vmatprep.subr.mxu0 0.0
      %1322 = vmatpush1.xpose.msra.mxu0 %v1238
      %1323 = vmatprep.subr.mxu0 0.0
      %1324 = vmatpush1.xpose.msra.mxu0 %v1237
      %1325 = vmatprep.subr.mxu0 0.0
      %1326 = vmatpush1.xpose.msra.mxu0 %v1236
      %1327 = vmatprep.subr.mxu0 0.0
      %1328 = vmatpush1.xpose.msra.mxu0 %v1235
      %1329 = vmatprep.subr.mxu0 0.0
      %1330 = vmatpush1.xpose.msra.mxu0 %v1234
      %1331 = vmatprep.subr.mxu0 0.0
      %1332 = vmatpush1.xpose.msra.mxu0 %v1233
      %1333 = vmatprep.subr.mxu0 0.0
      %1334 = vmatpush1.xpose.msra.mxu0 %v1232
      %1335 = vmatprep.subr.mxu0 0.0
      %1336 = vmatpush1.xpose.msra.mxu0 %v1231
      %1337 = vmatprep.subr.mxu0 0.0
      %1338 = vmatpush1.xpose.msra.mxu0 %v1230
      %1339 = vmatprep.subr.mxu0 0.0
      %1340 = vmatpush1.xpose.msra.mxu0 %v1229
      %1341 = vmatprep.subr.mxu0 0.0
      %1342 = vmatpush1.xpose.msra.mxu0 %v1228
      %1343 = vmatprep.subr.mxu0 0.0
      %1344 = vmatpush1.xpose.msra.mxu0 %v1227
      %1345 = vmatprep.subr.mxu0 0.0
      %1346 = vmatpush1.xpose.msra.mxu0 %v1226
      %1347 = vmatprep.subr.mxu0 0.0
      %1348 = vmatpush2.xpose.msra.mxu0 0.0
      %1349 = vmatprep.subr.mxu0 0.0
      %1350 = vmatpush2.xpose.msra.mxu0 0.0
      %1351 = vmatprep.subr.mxu0 0.0
      %1352 = vmatpush2.xpose.msra.mxu0 0.0
      %1353 = vmatprep.subr.mxu0 0.0
      %1354 = vmatpush2.xpose.msra.mxu0 0.0
      %1355 = vmatprep.subr.mxu0 0.0
      %1356 = vmatpush2.xpose.msra.mxu0 0.0
      %1357 = vmatprep.subr.mxu0 0.0
      %1358 = vmatpush2.xpose.msra.mxu0 0.0
      %1359 = vmatprep.subr.mxu0 0.0
      %1360 = vmatpush2.xpose.msra.mxu0 0.0
      %1361 = vmatprep.subr.mxu0 0.0
      %1362 = vmatpush2.xpose.msra.mxu0 0.0
      %1363 = vmatprep.subr.mxu0 0.0
      %1364 = vmatpush2.xpose.msra.mxu0 0.0
      %1365 = vmatprep.subr.mxu0 0.0
      %1366 = vmatpush2.xpose.msra.mxu0 0.0
      %1367 = vmatprep.subr.mxu0 0.0
      %1368 = vmatpush2.xpose.msra.mxu0 0.0
      %1369 = vmatprep.subr.mxu0 0.0
      %1370 = vmatpush2.xpose.msra.mxu0 0.0
      %1371 = vmatprep.subr.mxu0 0.0
      %1372 = vmatpush2.xpose.msra.mxu0 0.0
      %1373 = vmatprep.subr.mxu0 0.0
      %1374 = vmatpush2.xpose.msra.mxu0 0.0
      %1375 = vmatprep.subr.mxu0 0.0
      %1376 = vmatpush2.xpose.msra.mxu0 0.0
      %1377 = vmatprep.subr.mxu0 0.0
      %1378 = vmatpush2.xpose.msra.mxu0 0.0
      %1379 = vmatprep.mubr.f32.mxu0 0.0
      %1380 = vmatmul.mubr.f32.gmra.mxu0 %v196
      %v1381 = vpop.f32.mrf.mxu0
      %v1382 = vadd.f32 %v1312, %v1381
      %v1383 = vpop.f32.mrf.mxu0
      %1384 = vdwg.mxu0
      %1385 = vset.pattern.permute.xlu0 3
      %1386 = vperm.xlu0 %1385, %v202
      %v1387 = vpop.permute.xlu0 %1386
      %v1389 = vadd.f32 %v1382, %v1387
      %v1390 = vadd.f32 %v1389, %v440
      %1391 = vst [vmem:[%s192] sm:$0xff] %v1390
      %p1392 = scmp.lt.s32.totalorder %s15, 1
      %s1393 = scalar_select %p1392, %s15, 1
      %s1394 = smul.addr %s1393, 8
      %s1395 = scalar_lea.vmem %s4, %s1394
      // Predicated region
      $region44: #{mamba_block_forward.1} parent=35 // pred_check
        %p1396 = pneg %p122
      $region45: #{mamba_block_forward.1} parent=35 // pred_check_branch
        %1398 = sbr.rel (%p1396) target = $region47
      $region46: #{mamba_block_forward.1} parent=35 // pred_region
        _
      $region47: #{mamba_block_forward.1} parent=35 // pred_fallthru
        _
    $region36: #{mamba_block_forward.1} parent=5 // pred_fallthru
      _
    %p1399 = scmp.le.s32.totalorder 2, %s10
    // Predicated region
    $region48: #{mamba_block_forward.1} parent=5 // pred_check
      %p1400 = pneg %p1399
    $region49: #{mamba_block_forward.1} parent=5 // pred_check_branch
      %1402 = sbr.rel (%p1400) target = $region51
    $region50: #{mamba_block_forward.1} parent=5 // pred_region
      %s1403 = ssub.s32 %s10, 2
      // Predicated region
      $region52: #{mamba_block_forward.1} parent=50 // pred_check
        %p1404 = pneg %p128
      $region53: #{mamba_block_forward.1} parent=50 // pred_check_branch
        %1406 = sbr.rel (%p1404) target = $region55
      $region54: #{mamba_block_forward.1} parent=50 // pred_region
        %p1407 = scmp.lt.s32.totalorder %s16, 1
        %s1408 = scalar_select %p1407, %s16, 1
        %s1409 = smul.addr %s1408, 8
        %s1410 = scalar_lea.vmem %s4, %s1409
      $region55: #{mamba_block_forward.1} parent=50 // pred_fallthru
        _
    $region51: #{mamba_block_forward.1} parent=5 // pred_fallthru
      _
  $region6: #{mamba_block_forward.1} parent=0 // loop_footer
    %s14 = sadd.s32 1, %s10
  $region7: #{mamba_block_forward.1} parent=0 // loop_footer_branch
    %9 = sbr.rel target = $region3
  $region8: #{mamba_block_forward.1} parent=0 // loop_exit
    _

</llo_original>
